<compile_context>
chip_gen: v6e
topology: v6e:2x2x1
jax: 0.10.0
libtpu: 0.0.40
codegen_flags: <defaults>
</compile_context>

<pallas_src>
import functools

import jax
import jax.numpy as jnp
import numpy as np
from jax.experimental import pallas as pl
from jax.experimental.pallas import tpu as pltpu


def _text_sa_kernel(x_ref, wr_ref, br_ref, wp_ref, bp_ref, bias_ref, out_ref, *,
                    num_heads, head_dim, block_b, seq_len, hidden):
    """One grid step == one tile of `block_b` batch elements.

    x_ref   : (Bt, L, E) bf16        input embeddings for this tile
    wr_ref  : (E, H) bf16, br_ref (1, H) f32   reduce_dim Linear (pre-transposed)
    wp_ref  : (H, 2H + nh) bf16      fused [Q*1/sqrt(dh) | K | V @ w_fold / L]
    bp_ref  : (1, 2H) f32            fused [bq*1/sqrt(dh) | bk]
    bias_ref: (1,) f32 in SMEM       folded scalar bias (out_proj + cls + V-bias)
    out_ref : (Bt, 1, 1) f32         per-sample logits for this tile
    """
    Bt, L, H, dh = block_b, seq_len, hidden, head_dim
    E = x_ref.shape[-1]

    x = x_ref[...].reshape(Bt * L, E)                                    # (Bt*L, E)

    # reduce_dim: Linear(E -> H) + ReLU (f32 accumulate / elementwise).
    h = jnp.dot(x, wr_ref[...], preferred_element_type=jnp.float32) + br_ref[...]
    h = jnp.maximum(h, 0.0).astype(jnp.bfloat16)                         # (Bt*L, H)
    # TODO(synk): nn.Dropout is identity at inference; training-mode dropout omitted.

    # One fused projection for all heads: [Q(scaled) | K | folded-V].
    proj = jnp.dot(h, wp_ref[...], preferred_element_type=jnp.float32)   # (Bt*L, 2H+nh)
    bpv = bp_ref[...]
    q_all = (proj[:, :H] + bpv[:, :H]).astype(jnp.bfloat16).reshape(Bt, L, H)
    k_all = (proj[:, H:2 * H] + bpv[:, H:]).astype(jnp.bfloat16).reshape(Bt, L, H)
    vproj = proj[:, 2 * H:].reshape(Bt, L, num_heads)                    # (Bt, L, nh) f32

    # Per-head attention with scores kept transposed: sT[b, m, l] = q_l . k_m.
    # Softmax over keys (m) is a sublane reduce; the folded-V product is an
    # elementwise multiply -- the PV matmul / mean-pool / classifier are gone.
    acc = jnp.zeros((Bt, L, 1), jnp.float32)
    for i in range(num_heads):                                           # static unroll
        qh = q_all[:, :, i * dh:(i + 1) * dh]                            # (Bt, L, dh)
        kh = k_all[:, :, i * dh:(i + 1) * dh]
        sT = jnp.einsum('bmd,bld->bml', kh, qh,
                        preferred_element_type=jnp.float32)              # (Bt, Lm, Lq)
        sT = sT - jnp.max(sT, axis=1, keepdims=True)
        p = jnp.exp(sT)
        p = p * pl.reciprocal(jnp.sum(p, axis=1, keepdims=True), approx=True)
        colsum = jnp.sum(p, axis=2, keepdims=True)                       # (Bt, Lm, 1)
        acc = acc + colsum * vproj[:, :, i:i + 1]                        # (Bt, Lm, 1)

    out_ref[...] = jnp.sum(acc, axis=1, keepdims=True) + bias_ref[0]     # (Bt, 1, 1)


def text_sa_forward(x, params, num_heads, block_b=None):
    B, L, E = x.shape
    H = params["w_reduce"].shape[0]
    assert H % num_heads == 0, "hidden_size must be divisible by num_heads"
    dh = H // num_heads

    # Batch tile: ~512 MXU rows per grid step (amortizes per-step overhead and
    # fills the 256-row v6e/v7x MXU); also keep >= 2 grid steps so both v7x
    # TensorCores get a share of the "parallel" axis.
    if block_b is None:
        block_b = max(1, min(B, 512 // max(L, 1)))
        if B > 1:
            block_b = min(block_b, pl.cdiv(B, 2))
    G = pl.cdiv(B, block_b)
    Bp = G * block_b
    if Bp != B:
        x = jnp.pad(x, ((0, Bp - B), (0, 0), (0, 0)))   # padded rows sliced off below

    f32, bf16 = jnp.float32, jnp.bfloat16
    scale = 1.0 / float(dh) ** 0.5

    # reduce_dim, pre-transposed to (in, out).
    wr = params["w_reduce"].T.astype(bf16)                               # (E, H)
    br = params["b_reduce"].reshape(1, H).astype(f32)

    # Split the fused MHA in-projection ([q; k; v] rows, torch (out, in) layout)
    # and fold the 1/sqrt(dh) scale into Q.
    wq = params["in_proj_weight"][:H].T.astype(f32) * scale              # (H, H)
    wk = params["in_proj_weight"][H:2 * H].T.astype(f32)
    wv = params["in_proj_weight"][2 * H:].T.astype(f32)
    bq = params["in_proj_bias"][:H].astype(f32) * scale
    bk = params["in_proj_bias"][H:2 * H].astype(f32)
    bv = params["in_proj_bias"][2 * H:].astype(f32)

    # Fold out_proj + classifier into one (H, 1) column, then fold that column
    # and the 1/L mean pooling into the V projection -> (H, nh).
    w_fold = (params["out_proj_weight"].T.astype(f32)
              @ params["w_cls"].T.astype(f32))                           # (H, 1)
    wvf = jnp.einsum('khd,hd->kh',
                     wv.reshape(H, num_heads, dh),
                     w_fold.reshape(num_heads, dh)) / float(L)           # (H, nh)
    # Softmax rows sum to 1 => the V bias contributes a constant; fold it into
    # the scalar output bias together with out_proj / classifier biases.
    b_total = (params["out_proj_bias"].astype(f32) @ params["w_cls"].T.astype(f32)
               + params["b_cls"].astype(f32)
               + bv @ w_fold[:, 0]).reshape(1).astype(f32)               # (1,)

    wp = jnp.concatenate([wq, wk, wvf], axis=1).astype(bf16)             # (H, 2H+nh)
    bp = jnp.concatenate([bq, bk]).reshape(1, 2 * H).astype(f32)         # (1, 2H)

    kernel = functools.partial(_text_sa_kernel, num_heads=num_heads, head_dim=dh,
                               block_b=block_b, seq_len=L, hidden=H)

    def rep(shape):  # grid-invariant (replicated) weight spec
        n = len(shape)
        return pl.BlockSpec(shape, lambda g, _n=n: (0,) * _n)

    out = pl.pallas_call(
        kernel,
        out_shape=jax.ShapeDtypeStruct((Bp, 1, 1), jnp.float32),
        grid=(G,),
        in_specs=[
            pl.BlockSpec((block_b, L, E), lambda g: (g, 0, 0)),
            rep((E, H)), rep((1, H)),
            rep((H, 2 * H + num_heads)), rep((1, 2 * H)),
            pl.BlockSpec(memory_space=pltpu.MemorySpace.SMEM),           # scalar bias
        ],
        out_specs=pl.BlockSpec((block_b, 1, 1), lambda g: (g, 0, 0)),
        compiler_params=pltpu.CompilerParams(dimension_semantics=("parallel",)),
    )(x.astype(bf16), wr, br, wp, bp, b_total)

    return out.reshape(Bp, 1)[:B]


def text_sa_reference(x, params, num_heads):
    """Pure-JAX reference mirroring torch semantics (eval mode)."""
    h = jnp.maximum(x @ params["w_reduce"].T + params["b_reduce"], 0.0)
    B, L, H = h.shape
    dh = H // num_heads
    qkv = h @ params["in_proj_weight"].T + params["in_proj_bias"]
    q, k, v = qkv[..., :H], qkv[..., H:2 * H], qkv[..., 2 * H:]
    q = q.reshape(B, L, num_heads, dh).transpose(0, 2, 1, 3)
    k = k.reshape(B, L, num_heads, dh).transpose(0, 2, 1, 3)
    v = v.reshape(B, L, num_heads, dh).transpose(0, 2, 1, 3)
    s = jnp.einsum("bhld,bhmd->bhlm", q, k) / jnp.sqrt(jnp.float32(dh))
    p = jax.nn.softmax(s, axis=-1)
    o = jnp.einsum("bhlm,bhmd->bhld", p, v).transpose(0, 2, 1, 3).reshape(B, L, H)
    o = o @ params["out_proj_weight"].T + params["out_proj_bias"]
    pooled = jnp.mean(o, axis=1)
    return pooled @ params["w_cls"].T + params["b_cls"]


if __name__ == "__main__":
    # Small shapes consistent with the module.
    B, L = 6, 8
    txt_embed_size = 32
    hidden_size = 32
    num_heads = 4

    key = jax.random.PRNGKey(0)
    keys = jax.random.split(key, 10)

    params = {
        # reduce_dim: Linear(txt_embed_size -> hidden_size), torch layout (out, in)
        "w_reduce": 0.05 * jax.random.normal(keys[0], (hidden_size, txt_embed_size), jnp.float32),
        "b_reduce": 0.05 * jax.random.normal(keys[1], (hidden_size,), jnp.float32),
        # nn.MultiheadAttention fused in-projection: (3H, H), (3H,)
        "in_proj_weight": 0.05 * jax.random.normal(keys[2], (3 * hidden_size, hidden_size), jnp.float32),
        "in_proj_bias": 0.05 * jax.random.normal(keys[3], (3 * hidden_size,), jnp.float32),
        # MHA out_proj: (H, H), (H,)
        "out_proj_weight": 0.05 * jax.random.normal(keys[4], (hidden_size, hidden_size), jnp.float32),
        "out_proj_bias": 0.05 * jax.random.normal(keys[5], (hidden_size,), jnp.float32),
        # classifier: Linear(hidden_size -> 1)
        "w_cls": 0.05 * jax.random.normal(keys[6], (1, hidden_size), jnp.float32),
        "b_cls": 0.05 * jax.random.normal(keys[7], (1,), jnp.float32),
    }

    x_txt = jax.random.normal(keys[8], (B, L, txt_embed_size), jnp.float32)

    y_ref = text_sa_reference(x_txt, params, num_heads)

    # Default batch tile (auto heuristic -> 2 grid steps for B=6).
    y0 = jax.block_until_ready(text_sa_forward(x_txt, params, num_heads))
    # Explicit tile of 4: exercises the multi-step grid + batch-padding path.
    y1 = jax.block_until_ready(text_sa_forward(x_txt, params, num_heads, block_b=4))

    # Tolerance covers bf16 MXU inputs (f32 accumulation) and the approximate
    # EUP reciprocal used for the softmax denominator.
    np.testing.assert_allclose(np.asarray(y0), np.asarray(y_ref), rtol=2e-2, atol=2e-3)
    np.testing.assert_allclose(np.asarray(y1), np.asarray(y_ref), rtol=2e-2, atol=2e-3)
    assert y0.shape == (B, 1) and y1.shape == (B, 1)

    print("KERNEL_OK")
</pallas_src>

<mosaic_0001>
module attributes {stable_mosaic.version = 11 : i64} {
  func.func @_text_sa_kernel(%arg0: i32, %arg1: memref<3x8x32xbf16, #tpu.memory_space<vmem>>, %arg2: memref<32x32xbf16, #tpu.memory_space<vmem>>, %arg3: memref<1x32xf32, #tpu.memory_space<vmem>>, %arg4: memref<32x68xbf16, #tpu.memory_space<vmem>>, %arg5: memref<1x64xf32, #tpu.memory_space<vmem>>, %arg6: memref<1xf32, #tpu.memory_space<smem>>, %arg7: memref<3x1x1xf32, #tpu.memory_space<vmem>>) attributes {dimension_semantics = [#tpu.dimension_semantics<parallel>], iteration_bounds = array<i64: 2>, scalar_prefetch = 0 : i64, scratch_operands = 0 : i64, tpu.core_type = #tpu.core_type<tc>, window_params = [{transform_indices = @transform_0, window_bounds = array<i64: 3, 8, 32>}, {pipeline_mode = #tpu.pipeline_mode<synchronous>, transform_indices = @transform_1, window_bounds = array<i64: 32, 32>}, {pipeline_mode = #tpu.pipeline_mode<synchronous>, transform_indices = @transform_2, window_bounds = array<i64: 1, 32>}, {pipeline_mode = #tpu.pipeline_mode<synchronous>, transform_indices = @transform_3, window_bounds = array<i64: 32, 68>}, {pipeline_mode = #tpu.pipeline_mode<synchronous>, transform_indices = @transform_4, window_bounds = array<i64: 1, 64>}, {transform_indices = @transform_5, window_bounds = array<i64: 1>}, {transform_indices = @transform_6, window_bounds = array<i64: 3, 1, 1>}]} {
    %c0 = arith.constant 0 : index
    %c0_0 = arith.constant 0 : index
    %c0_1 = arith.constant 0 : index
    %0 = vector.load %arg1[%c0, %c0_0, %c0_1] : memref<3x8x32xbf16, #tpu.memory_space<vmem>>, vector<3x8x32xbf16>
    %1 = vector.shape_cast %0 : vector<3x8x32xbf16> to vector<24x32xbf16>
    %c0_2 = arith.constant 0 : index
    %c0_3 = arith.constant 0 : index
    %2 = vector.load %arg2[%c0_2, %c0_3] : memref<32x32xbf16, #tpu.memory_space<vmem>>, vector<32x32xbf16>
    %cst = arith.constant dense<0.000000e+00> : vector<24x32xf32>
    %3 = tpu.matmul %1, %2, %cst {dimension_numbers = #tpu.dot_dimension_numbers<[1], [0], [0], [1], [0, 0, 1, 1], [], []>} : vector<24x32xbf16>, vector<32x32xbf16>, vector<24x32xf32> -> vector<24x32xf32>
    %c0_4 = arith.constant 0 : index
    %c0_5 = arith.constant 0 : index
    %4 = vector.load %arg3[%c0_4, %c0_5] : memref<1x32xf32, #tpu.memory_space<vmem>>, vector<1x32xf32>
    %5 = vector.broadcast %4 : vector<1x32xf32> to vector<24x32xf32>
    %6 = arith.addf %3, %5 : vector<24x32xf32>
    %cst_6 = arith.constant 0.000000e+00 : f32
    %7 = vector.broadcast %cst_6 : f32 to vector<24x32xf32>
    %8 = arith.maximumf %6, %7 : vector<24x32xf32>
    %9 = arith.truncf %8 : vector<24x32xf32> to vector<24x32xbf16>
    %c0_7 = arith.constant 0 : index
    %c0_8 = arith.constant 0 : index
    %10 = vector.load %arg4[%c0_7, %c0_8] : memref<32x68xbf16, #tpu.memory_space<vmem>>, vector<32x68xbf16>
    %cst_9 = arith.constant dense<0.000000e+00> : vector<24x68xf32>
    %11 = tpu.matmul %9, %10, %cst_9 {dimension_numbers = #tpu.dot_dimension_numbers<[1], [0], [0], [1], [0, 0, 1, 1], [], []>} : vector<24x32xbf16>, vector<32x68xbf16>, vector<24x68xf32> -> vector<24x68xf32>
    %c0_10 = arith.constant 0 : index
    %c0_11 = arith.constant 0 : index
    %12 = vector.load %arg5[%c0_10, %c0_11] : memref<1x64xf32, #tpu.memory_space<vmem>>, vector<1x64xf32>
    %13 = vector.extract_strided_slice %11 {offsets = [0, 0], sizes = [24, 32], strides = [1, 1]} : vector<24x68xf32> to vector<24x32xf32>
    %14 = vector.extract_strided_slice %12 {offsets = [0, 0], sizes = [1, 32], strides = [1, 1]} : vector<1x64xf32> to vector<1x32xf32>
    %15 = vector.broadcast %14 : vector<1x32xf32> to vector<24x32xf32>
    %16 = arith.addf %13, %15 : vector<24x32xf32>
    %17 = arith.truncf %16 : vector<24x32xf32> to vector<24x32xbf16>
    %18 = vector.shape_cast %17 : vector<24x32xbf16> to vector<3x8x32xbf16>
    %19 = vector.extract_strided_slice %11 {offsets = [0, 32], sizes = [24, 32], strides = [1, 1]} : vector<24x68xf32> to vector<24x32xf32>
    %20 = vector.extract_strided_slice %12 {offsets = [0, 32], sizes = [1, 32], strides = [1, 1]} : vector<1x64xf32> to vector<1x32xf32>
    %21 = vector.broadcast %20 : vector<1x32xf32> to vector<24x32xf32>
    %22 = arith.addf %19, %21 : vector<24x32xf32>
    %23 = arith.truncf %22 : vector<24x32xf32> to vector<24x32xbf16>
    %24 = vector.shape_cast %23 : vector<24x32xbf16> to vector<3x8x32xbf16>
    %25 = vector.extract_strided_slice %11 {offsets = [0, 64], sizes = [24, 4], strides = [1, 1]} : vector<24x68xf32> to vector<24x4xf32>
    %26 = vector.shape_cast %25 : vector<24x4xf32> to vector<3x8x4xf32>
    %cst_12 = arith.constant 0.000000e+00 : f32
    %27 = vector.broadcast %cst_12 : f32 to vector<3x8x1xf32>
    %28 = vector.extract_strided_slice %18 {offsets = [0, 0, 0], sizes = [3, 8, 8], strides = [1, 1, 1]} : vector<3x8x32xbf16> to vector<3x8x8xbf16>
    %29 = vector.extract_strided_slice %24 {offsets = [0, 0, 0], sizes = [3, 8, 8], strides = [1, 1, 1]} : vector<3x8x32xbf16> to vector<3x8x8xbf16>
    "tpu.trace_start"() <{level = 10 : i32, message = "bmd,bld->bml"}> : () -> ()
    %cst_13 = arith.constant dense<0.000000e+00> : vector<3x8x8xf32>
    %30 = tpu.matmul %29, %28, %cst_13 {dimension_numbers = #tpu.dot_dimension_numbers<[2], [2], [1], [1], [0, 0, 0, 1, 1, 1], [0], [0]>} : vector<3x8x8xbf16>, vector<3x8x8xbf16>, vector<3x8x8xf32> -> vector<3x8x8xf32>
    "tpu.trace_stop"() : () -> ()
    %cst_14 = arith.constant dense<0xFF800000> : vector<3x8xf32>
    %31 = vector.multi_reduction <maximumf>, %30, %cst_14 [1] : vector<3x8x8xf32> to vector<3x8xf32>
    %32 = vector.shape_cast %31 : vector<3x8xf32> to vector<3x1x8xf32>
    %33 = vector.broadcast %32 : vector<3x1x8xf32> to vector<3x8x8xf32>
    %34 = arith.subf %30, %33 : vector<3x8x8xf32>
    %35 = math.exp %34 : vector<3x8x8xf32>
    %cst_15 = arith.constant dense<0.000000e+00> : vector<3x8xf32>
    %36 = vector.multi_reduction <add>, %35, %cst_15 [1] : vector<3x8x8xf32> to vector<3x8xf32>
    %37 = vector.shape_cast %36 : vector<3x8xf32> to vector<3x1x8xf32>
    %38 = tpu.reciprocal %37 {approx = true} : vector<3x1x8xf32> -> vector<3x1x8xf32>
    %39 = vector.broadcast %38 : vector<3x1x8xf32> to vector<3x8x8xf32>
    %40 = arith.mulf %35, %39 : vector<3x8x8xf32>
    %cst_16 = arith.constant dense<0.000000e+00> : vector<3x8xf32>
    %41 = vector.multi_reduction <add>, %40, %cst_16 [2] : vector<3x8x8xf32> to vector<3x8xf32>
    %42 = vector.shape_cast %41 : vector<3x8xf32> to vector<3x8x1xf32>
    %43 = vector.extract_strided_slice %26 {offsets = [0, 0, 0], sizes = [3, 8, 1], strides = [1, 1, 1]} : vector<3x8x4xf32> to vector<3x8x1xf32>
    %44 = arith.mulf %42, %43 : vector<3x8x1xf32>
    %45 = arith.addf %27, %44 : vector<3x8x1xf32>
    %46 = vector.extract_strided_slice %18 {offsets = [0, 0, 8], sizes = [3, 8, 8], strides = [1, 1, 1]} : vector<3x8x32xbf16> to vector<3x8x8xbf16>
    %47 = vector.extract_strided_slice %24 {offsets = [0, 0, 8], sizes = [3, 8, 8], strides = [1, 1, 1]} : vector<3x8x32xbf16> to vector<3x8x8xbf16>
    "tpu.trace_start"() <{level = 10 : i32, message = "bmd,bld->bml"}> : () -> ()
    %cst_17 = arith.constant dense<0.000000e+00> : vector<3x8x8xf32>
    %48 = tpu.matmul %47, %46, %cst_17 {dimension_numbers = #tpu.dot_dimension_numbers<[2], [2], [1], [1], [0, 0, 0, 1, 1, 1], [0], [0]>} : vector<3x8x8xbf16>, vector<3x8x8xbf16>, vector<3x8x8xf32> -> vector<3x8x8xf32>
    "tpu.trace_stop"() : () -> ()
    %cst_18 = arith.constant dense<0xFF800000> : vector<3x8xf32>
    %49 = vector.multi_reduction <maximumf>, %48, %cst_18 [1] : vector<3x8x8xf32> to vector<3x8xf32>
    %50 = vector.shape_cast %49 : vector<3x8xf32> to vector<3x1x8xf32>
    %51 = vector.broadcast %50 : vector<3x1x8xf32> to vector<3x8x8xf32>
    %52 = arith.subf %48, %51 : vector<3x8x8xf32>
    %53 = math.exp %52 : vector<3x8x8xf32>
    %cst_19 = arith.constant dense<0.000000e+00> : vector<3x8xf32>
    %54 = vector.multi_reduction <add>, %53, %cst_19 [1] : vector<3x8x8xf32> to vector<3x8xf32>
    %55 = vector.shape_cast %54 : vector<3x8xf32> to vector<3x1x8xf32>
    %56 = tpu.reciprocal %55 {approx = true} : vector<3x1x8xf32> -> vector<3x1x8xf32>
    %57 = vector.broadcast %56 : vector<3x1x8xf32> to vector<3x8x8xf32>
    %58 = arith.mulf %53, %57 : vector<3x8x8xf32>
    %cst_20 = arith.constant dense<0.000000e+00> : vector<3x8xf32>
    %59 = vector.multi_reduction <add>, %58, %cst_20 [2] : vector<3x8x8xf32> to vector<3x8xf32>
    %60 = vector.shape_cast %59 : vector<3x8xf32> to vector<3x8x1xf32>
    %61 = vector.extract_strided_slice %26 {offsets = [0, 0, 1], sizes = [3, 8, 1], strides = [1, 1, 1]} : vector<3x8x4xf32> to vector<3x8x1xf32>
    %62 = arith.mulf %60, %61 : vector<3x8x1xf32>
    %63 = arith.addf %45, %62 : vector<3x8x1xf32>
    %64 = vector.extract_strided_slice %18 {offsets = [0, 0, 16], sizes = [3, 8, 8], strides = [1, 1, 1]} : vector<3x8x32xbf16> to vector<3x8x8xbf16>
    %65 = vector.extract_strided_slice %24 {offsets = [0, 0, 16], sizes = [3, 8, 8], strides = [1, 1, 1]} : vector<3x8x32xbf16> to vector<3x8x8xbf16>
    "tpu.trace_start"() <{level = 10 : i32, message = "bmd,bld->bml"}> : () -> ()
    %cst_21 = arith.constant dense<0.000000e+00> : vector<3x8x8xf32>
    %66 = tpu.matmul %65, %64, %cst_21 {dimension_numbers = #tpu.dot_dimension_numbers<[2], [2], [1], [1], [0, 0, 0, 1, 1, 1], [0], [0]>} : vector<3x8x8xbf16>, vector<3x8x8xbf16>, vector<3x8x8xf32> -> vector<3x8x8xf32>
    "tpu.trace_stop"() : () -> ()
    %cst_22 = arith.constant dense<0xFF800000> : vector<3x8xf32>
    %67 = vector.multi_reduction <maximumf>, %66, %cst_22 [1] : vector<3x8x8xf32> to vector<3x8xf32>
    %68 = vector.shape_cast %67 : vector<3x8xf32> to vector<3x1x8xf32>
    %69 = vector.broadcast %68 : vector<3x1x8xf32> to vector<3x8x8xf32>
    %70 = arith.subf %66, %69 : vector<3x8x8xf32>
    %71 = math.exp %70 : vector<3x8x8xf32>
    %cst_23 = arith.constant dense<0.000000e+00> : vector<3x8xf32>
    %72 = vector.multi_reduction <add>, %71, %cst_23 [1] : vector<3x8x8xf32> to vector<3x8xf32>
    %73 = vector.shape_cast %72 : vector<3x8xf32> to vector<3x1x8xf32>
    %74 = tpu.reciprocal %73 {approx = true} : vector<3x1x8xf32> -> vector<3x1x8xf32>
    %75 = vector.broadcast %74 : vector<3x1x8xf32> to vector<3x8x8xf32>
    %76 = arith.mulf %71, %75 : vector<3x8x8xf32>
    %cst_24 = arith.constant dense<0.000000e+00> : vector<3x8xf32>
    %77 = vector.multi_reduction <add>, %76, %cst_24 [2] : vector<3x8x8xf32> to vector<3x8xf32>
    %78 = vector.shape_cast %77 : vector<3x8xf32> to vector<3x8x1xf32>
    %79 = vector.extract_strided_slice %26 {offsets = [0, 0, 2], sizes = [3, 8, 1], strides = [1, 1, 1]} : vector<3x8x4xf32> to vector<3x8x1xf32>
    %80 = arith.mulf %78, %79 : vector<3x8x1xf32>
    %81 = arith.addf %63, %80 : vector<3x8x1xf32>
    %82 = vector.extract_strided_slice %18 {offsets = [0, 0, 24], sizes = [3, 8, 8], strides = [1, 1, 1]} : vector<3x8x32xbf16> to vector<3x8x8xbf16>
    %83 = vector.extract_strided_slice %24 {offsets = [0, 0, 24], sizes = [3, 8, 8], strides = [1, 1, 1]} : vector<3x8x32xbf16> to vector<3x8x8xbf16>
    "tpu.trace_start"() <{level = 10 : i32, message = "bmd,bld->bml"}> : () -> ()
    %cst_25 = arith.constant dense<0.000000e+00> : vector<3x8x8xf32>
    %84 = tpu.matmul %83, %82, %cst_25 {dimension_numbers = #tpu.dot_dimension_numbers<[2], [2], [1], [1], [0, 0, 0, 1, 1, 1], [0], [0]>} : vector<3x8x8xbf16>, vector<3x8x8xbf16>, vector<3x8x8xf32> -> vector<3x8x8xf32>
    "tpu.trace_stop"() : () -> ()
    %cst_26 = arith.constant dense<0xFF800000> : vector<3x8xf32>
    %85 = vector.multi_reduction <maximumf>, %84, %cst_26 [1] : vector<3x8x8xf32> to vector<3x8xf32>
    %86 = vector.shape_cast %85 : vector<3x8xf32> to vector<3x1x8xf32>
    %87 = vector.broadcast %86 : vector<3x1x8xf32> to vector<3x8x8xf32>
    %88 = arith.subf %84, %87 : vector<3x8x8xf32>
    %89 = math.exp %88 : vector<3x8x8xf32>
    %cst_27 = arith.constant dense<0.000000e+00> : vector<3x8xf32>
    %90 = vector.multi_reduction <add>, %89, %cst_27 [1] : vector<3x8x8xf32> to vector<3x8xf32>
    %91 = vector.shape_cast %90 : vector<3x8xf32> to vector<3x1x8xf32>
    %92 = tpu.reciprocal %91 {approx = true} : vector<3x1x8xf32> -> vector<3x1x8xf32>
    %93 = vector.broadcast %92 : vector<3x1x8xf32> to vector<3x8x8xf32>
    %94 = arith.mulf %89, %93 : vector<3x8x8xf32>
    %cst_28 = arith.constant dense<0.000000e+00> : vector<3x8xf32>
    %95 = vector.multi_reduction <add>, %94, %cst_28 [2] : vector<3x8x8xf32> to vector<3x8xf32>
    %96 = vector.shape_cast %95 : vector<3x8xf32> to vector<3x8x1xf32>
    %97 = vector.extract_strided_slice %26 {offsets = [0, 0, 3], sizes = [3, 8, 1], strides = [1, 1, 1]} : vector<3x8x4xf32> to vector<3x8x1xf32>
    %98 = arith.mulf %96, %97 : vector<3x8x1xf32>
    %99 = arith.addf %81, %98 : vector<3x8x1xf32>
    %cst_29 = arith.constant dense<0.000000e+00> : vector<3x1xf32>
    %100 = vector.multi_reduction <add>, %99, %cst_29 [1] : vector<3x8x1xf32> to vector<3x1xf32>
    %101 = vector.shape_cast %100 : vector<3x1xf32> to vector<3x1x1xf32>
    %c0_30 = arith.constant 0 : index
    %102 = memref.load %arg6[%c0_30] : memref<1xf32, #tpu.memory_space<smem>>
    %103 = vector.broadcast %102 : f32 to vector<3x1x1xf32>
    %104 = arith.addf %101, %103 : vector<3x1x1xf32>
    %c0_31 = arith.constant 0 : index
    %c0_32 = arith.constant 0 : index
    %c0_33 = arith.constant 0 : index
    %105 = vector.load %arg7[%c0_31, %c0_32, %c0_33] : memref<3x1x1xf32, #tpu.memory_space<vmem>>, vector<3x1x1xf32>
    tpu.vector_store %arg7[%c0_31, %c0_32, %c0_33], %104 {strides = array<i32>} : memref<3x1x1xf32, #tpu.memory_space<vmem>>, vector<3x1x1xf32>,
    return
  }
  func.func @transform_0(%arg0: i32) -> (i32, i32, i32) {
    %c0_i32 = arith.constant 0 : i32
    %c0_i32_0 = arith.constant 0 : i32
    %c0_i32_1 = arith.constant 0 : i32
    return %arg0, %c0_i32, %c0_i32_0 : i32, i32, i32
  }
  func.func @transform_1(%arg0: i32) -> (i32, i32) {
    %c0_i32 = arith.constant 0 : i32
    %c0_i32_0 = arith.constant 0 : i32
    %c0_i32_1 = arith.constant 0 : i32
    return %c0_i32, %c0_i32_0 : i32, i32
  }
  func.func @transform_2(%arg0: i32) -> (i32, i32) {
    %c0_i32 = arith.constant 0 : i32
    %c0_i32_0 = arith.constant 0 : i32
    %c0_i32_1 = arith.constant 0 : i32
    return %c0_i32, %c0_i32_0 : i32, i32
  }
  func.func @transform_3(%arg0: i32) -> (i32, i32) {
    %c0_i32 = arith.constant 0 : i32
    %c0_i32_0 = arith.constant 0 : i32
    %c0_i32_1 = arith.constant 0 : i32
    return %c0_i32, %c0_i32_0 : i32, i32
  }
  func.func @transform_4(%arg0: i32) -> (i32, i32) {
    %c0_i32 = arith.constant 0 : i32
    %c0_i32_0 = arith.constant 0 : i32
    %c0_i32_1 = arith.constant 0 : i32
    return %c0_i32, %c0_i32_0 : i32, i32
  }
  func.func @transform_5(%arg0: i32) -> i32 {
    %c0_i32 = arith.constant 0 : i32
    %c0_i32_0 = arith.constant 0 : i32
    return %c0_i32 : i32
  }
  func.func @transform_6(%arg0: i32) -> (i32, i32, i32) {
    %c0_i32 = arith.constant 0 : i32
    %c0_i32_0 = arith.constant 0 : i32
    %c0_i32_1 = arith.constant 0 : i32
    return %arg0, %c0_i32, %c0_i32_0 : i32, i32, i32
  }
}

</mosaic_0001>

<llo_original>
// kernel: tpu_custom_call.1
$region0: #{tpu_custom_call.1}
  #allocation0 [shape = 'u32[]', space=smem, size = 0x4, offset = 0x4, fixed_abs, tag = 'smem constant byte address 0x4 - core index']
  #allocation1 [shape = 'u32[144,128]{1,0:T(1,128)}', space=vmem, size = 0x12000, scoped, tag = 'internal scratch']
  #allocation2 [shape = 'f32[1]{0:T(128)S(6)}', space=smem, size = 0x200, scoped, tag = 'scoped memory for tpu_custom_call.1']
  %s0 = inlined_call_operand.hbm [shape: bf16[6,8,32], index: 0, kind: input, shape index: {}]
  %s1 = inlined_call_operand.hbm [shape: bf16[32,32], index: 1, kind: input, shape index: {}]
  %s2 = inlined_call_operand.vmem [shape: f32[1,32], index: 2, kind: input, shape index: {}]
  %s3 = inlined_call_operand.hbm [shape: bf16[32,68], index: 3, kind: input, shape index: {}]
  %s4 = inlined_call_operand.vmem [shape: f32[1,64], index: 4, kind: input, shape index: {}]
  %s5 = inlined_call_operand.<no memory space> [shape: f32[1], index: 5, kind: input, shape index: {}]
  %s6 = inlined_call_operand.vmem [shape: f32[6,1,1], index: 6, kind: output, shape index: {}]
  %s7 = sld [smem:[#allocation0]]
  $region69: #{tpu_custom_call.1} parent=0
    _
  %s9 = ssub.s32 1, %s7
  %s10 = scalar_select 0, %s9, %s7
  %11 = sst [smem:[#allocation2]] %s5
  $region1: #{tpu_custom_call.1} parent=0
    #allocation3 [shape = 'u8[12288]{0}', space=vmem, size = 0x3000, scoped, tag = 'input window, operand 0']
    #allocation4 [shape = 's32[2]{0}', space=sflag, size = 0x8, scoped, tag = 'scoped memory for tpu_custom_call.1']
    #allocation5 [shape = 'u8[8192]{0}', space=vmem, size = 0x2000, scoped, tag = 'input window, operand 1, single buffered']
    #allocation6 [shape = 's32[1]{0}', space=sflag, size = 0x4, scoped, tag = 'scoped memory for tpu_custom_call.1']
    #allocation7 [shape = 'u8[8192]{0}', space=vmem, size = 0x2000, scoped, tag = 'input window, operand 3, single buffered']
    %12 = vsyncpa [#allocation4], 0
    %s13 = scalar_lea.sflag [#allocation4], 1
    %14 = vsyncpa %s13, 0
    %15 = vsyncpa [#allocation6], 0
    loop: start=0, step=1, limit=4
    $region2: #{tpu_custom_call.1} parent=1 // loop_pre_header
      _
    $region3: #{tpu_custom_call.1} parent=1 // loop_header
      %s17 = sphi 0, %s21
      %p18 = scmp.ge.s32.totalorder %s17, 4
      %s27 = sphi 0, %s29
      %s30 = sphi 0, %s27
      %s31 = sphi 0, %s30
      %s47 = sphi 0, %s31
      %s51 = sphi 0, %s51
      %s53 = sphi 0, %s51
      %s54 = sphi 0, %s53
      %s68 = sphi 0, %s54
      %s72 = sphi 0, %s72
      %s74 = sphi 0, %s72
      %s75 = sphi 0, %s74
      %s89 = sphi 0, %s75
      %s93 = sphi 0, %s93
      %s95 = sphi 0, %s93
      %s96 = sphi 0, %s95
      %s110 = sphi 0, %s96
      %s114 = sphi 0, %s114
      %s116 = sphi 0, %s114
      %s117 = sphi 0, %s116
      %s131 = sphi 0, %s117
      %s135 = sphi 0, %s135
      %s137 = sphi 0, %s135
      %s138 = sphi 0, %s137
      %s152 = sphi 0, %s138
      %s158 = sphi 0, %s160
      %s161 = sphi 0, %s158
      %s162 = sphi 0, %s161
      %s178 = sphi 0, %s162
    $region4: #{tpu_custom_call.1} parent=1 // loop_header_branch
      %20 = sbr.rel (%p18) target = $region8
    $region5: #{tpu_custom_call.1} parent=1 // loop_body
      %s22 = ssub.s32 %s17, 1
      %s23 = ssub.s32 %s17, 2
      %s24 = sadd.s32 %s17, 1
      %s25 = ssub.s32 %s17, %s24
      %p26 = scmp.eq.s32.totalorder %s25, 0
      %s28 = sadd.s32 %s27, 1
      %s29 = scalar_select %p26, %s27, %s28
      %p32 = pneg %p26
      %p33 = scmp.eq.s32.totalorder %s17, 1
      %p34 = por %p32, %p33
      %p35 = scmp.ne.s32.totalorder %s27, %s30
      %p36 = scmp.eq.s32.totalorder %s17, 0
      %p37 = por %p35, %p36
      %p38 = scmp.ne.s32.totalorder %s27, %s30
      %p39 = scmp.eq.s32.totalorder %s22, 1
      %p40 = por %p38, %p39
      %p41 = scmp.ne.s32.totalorder %s30, %s31
      %p42 = scmp.eq.s32.totalorder %s22, 0
      %p43 = por %p41, %p42
      %p44 = scmp.ne.s32.totalorder %s30, %s31
      %p45 = scmp.eq.s32.totalorder %s23, 1
      %p46 = por %p44, %p45
      %p48 = scmp.ne.s32.totalorder %s31, %s47
      %p49 = scmp.eq.s32.totalorder %s23, 0
      %p50 = por %p48, %p49
      %s52 = sadd.s32 %s51, 1
      %p55 = scmp.eq.s32.totalorder %s17, 1
      %p56 = scmp.ne.s32.totalorder %s51, %s53
      %p57 = scmp.eq.s32.totalorder %s17, 0
      %p58 = por %p56, %p57
      %p59 = scmp.ne.s32.totalorder %s51, %s53
      %p60 = scmp.eq.s32.totalorder %s22, 1
      %p61 = por %p59, %p60
      %p62 = scmp.ne.s32.totalorder %s53, %s54
      %p63 = scmp.eq.s32.totalorder %s22, 0
      %p64 = por %p62, %p63
      %p65 = scmp.ne.s32.totalorder %s53, %s54
      %p66 = scmp.eq.s32.totalorder %s23, 1
      %p67 = por %p65, %p66
      %p69 = scmp.ne.s32.totalorder %s54, %s68
      %p70 = scmp.eq.s32.totalorder %s23, 0
      %p71 = por %p69, %p70
      %s73 = sadd.s32 %s72, 1
      %p76 = scmp.eq.s32.totalorder %s17, 1
      %p77 = scmp.ne.s32.totalorder %s72, %s74
      %p78 = scmp.eq.s32.totalorder %s17, 0
      %p79 = por %p77, %p78
      %p80 = scmp.ne.s32.totalorder %s72, %s74
      %p81 = scmp.eq.s32.totalorder %s22, 1
      %p82 = por %p80, %p81
      %p83 = scmp.ne.s32.totalorder %s74, %s75
      %p84 = scmp.eq.s32.totalorder %s22, 0
      %p85 = por %p83, %p84
      %p86 = scmp.ne.s32.totalorder %s74, %s75
      %p87 = scmp.eq.s32.totalorder %s23, 1
      %p88 = por %p86, %p87
      %p90 = scmp.ne.s32.totalorder %s75, %s89
      %p91 = scmp.eq.s32.totalorder %s23, 0
      %p92 = por %p90, %p91
      %s94 = sadd.s32 %s93, 1
      %p97 = scmp.eq.s32.totalorder %s17, 1
      %p98 = scmp.ne.s32.totalorder %s93, %s95
      %p99 = scmp.eq.s32.totalorder %s17, 0
      %p100 = por %p98, %p99
      %p101 = scmp.ne.s32.totalorder %s93, %s95
      %p102 = scmp.eq.s32.totalorder %s22, 1
      %p103 = por %p101, %p102
      %p104 = scmp.ne.s32.totalorder %s95, %s96
      %p105 = scmp.eq.s32.totalorder %s22, 0
      %p106 = por %p104, %p105
      %p107 = scmp.ne.s32.totalorder %s95, %s96
      %p108 = scmp.eq.s32.totalorder %s23, 1
      %p109 = por %p107, %p108
      %p111 = scmp.ne.s32.totalorder %s96, %s110
      %p112 = scmp.eq.s32.totalorder %s23, 0
      %p113 = por %p111, %p112
      %s115 = sadd.s32 %s114, 1
      %p118 = scmp.eq.s32.totalorder %s17, 1
      %p119 = scmp.ne.s32.totalorder %s114, %s116
      %p120 = scmp.eq.s32.totalorder %s17, 0
      %p121 = por %p119, %p120
      %p122 = scmp.ne.s32.totalorder %s114, %s116
      %p123 = scmp.eq.s32.totalorder %s22, 1
      %p124 = por %p122, %p123
      %p125 = scmp.ne.s32.totalorder %s116, %s117
      %p126 = scmp.eq.s32.totalorder %s22, 0
      %p127 = por %p125, %p126
      %p128 = scmp.ne.s32.totalorder %s116, %s117
      %p129 = scmp.eq.s32.totalorder %s23, 1
      %p130 = por %p128, %p129
      %p132 = scmp.ne.s32.totalorder %s117, %s131
      %p133 = scmp.eq.s32.totalorder %s23, 0
      %p134 = por %p132, %p133
      %s136 = sadd.s32 %s135, 1
      %p139 = scmp.eq.s32.totalorder %s17, 1
      %p140 = scmp.ne.s32.totalorder %s135, %s137
      %p141 = scmp.eq.s32.totalorder %s17, 0
      %p142 = por %p140, %p141
      %p143 = scmp.ne.s32.totalorder %s135, %s137
      %p144 = scmp.eq.s32.totalorder %s22, 1
      %p145 = por %p143, %p144
      %p146 = scmp.ne.s32.totalorder %s137, %s138
      %p147 = scmp.eq.s32.totalorder %s22, 0
      %p148 = por %p146, %p147
      %p149 = scmp.ne.s32.totalorder %s137, %s138
      %p150 = scmp.eq.s32.totalorder %s23, 1
      %p151 = por %p149, %p150
      %p153 = scmp.ne.s32.totalorder %s138, %s152
      %p154 = scmp.eq.s32.totalorder %s23, 0
      %p155 = por %p153, %p154
      %s156 = ssub.s32 %s17, %s24
      %p157 = scmp.eq.s32.totalorder %s156, 0
      %s159 = sadd.s32 %s158, 1
      %s160 = scalar_select %p157, %s158, %s159
      %p163 = pneg %p157
      %p164 = scmp.eq.s32.totalorder %s17, 1
      %p165 = por %p163, %p164
      %p166 = scmp.ne.s32.totalorder %s158, %s161
      %p167 = scmp.eq.s32.totalorder %s17, 0
      %p168 = por %p166, %p167
      %p169 = scmp.ne.s32.totalorder %s158, %s161
      %p170 = scmp.eq.s32.totalorder %s22, 1
      %p171 = por %p169, %p170
      %p172 = scmp.ne.s32.totalorder %s161, %s162
      %p173 = scmp.eq.s32.totalorder %s22, 0
      %p174 = por %p172, %p173
      %p175 = scmp.ne.s32.totalorder %s161, %s162
      %p176 = scmp.eq.s32.totalorder %s23, 1
      %p177 = por %p175, %p176
      %p179 = scmp.ne.s32.totalorder %s162, %s178
      %p180 = scmp.eq.s32.totalorder %s23, 0
      %p181 = por %p179, %p180
      %p182 = scmp.le.s32.totalorder 1, %s17
      %p183 = scmp.lt.s32.totalorder %s17, 3
      %p184 = pnand %p182, %p183
      %p185 = pneg %p184
      // Predicated region
      $region9: #{tpu_custom_call.1} parent=5 // pred_check
        _
      $region10: #{tpu_custom_call.1} parent=5 // pred_check_branch
        %187 = sbr.rel (%p184) target = $region12
      $region11: #{tpu_custom_call.1} parent=5 // pred_region
        %s188 = ssub.s32 %s17, 1
        // Predicated region
        $region13: #{tpu_custom_call.1} parent=11 // pred_check
          %p189 = pneg %p64
        $region14: #{tpu_custom_call.1} parent=11 // pred_check_branch
          %191 = sbr.rel (%p189) target = $region16
        $region15: #{tpu_custom_call.1} parent=11 // pred_region
          %s193 = ssub.s32 256, 256
          %194 = vsyncadd [#allocation6], %s193
          %s195 = sshll.u32 [#allocation5], 4
          %s196 = int_to_ptr.vmem [resolvable:$true] %s195
          %201 = dma.hbm_to_vmem [thread:$0]  %s1, 256, %s196, [#allocation6], 64, 64, 4
        $region16: #{tpu_custom_call.1} parent=11 // pred_fallthru
          _
        // Predicated region
        $region17: #{tpu_custom_call.1} parent=11 // pred_check
          %p202 = pneg %p85
        $region18: #{tpu_custom_call.1} parent=11 // pred_check_branch
          %204 = sbr.rel (%p202) target = $region20
        $region19: #{tpu_custom_call.1} parent=11 // pred_region
          _
        $region20: #{tpu_custom_call.1} parent=11 // pred_fallthru
          _
        // Predicated region
        $region21: #{tpu_custom_call.1} parent=11 // pred_check
          %p205 = pneg %p106
        $region22: #{tpu_custom_call.1} parent=11 // pred_check_branch
          %207 = sbr.rel (%p205) target = $region24
        $region23: #{tpu_custom_call.1} parent=11 // pred_region
          %s209 = ssub.s32 256, 256
          %210 = vsyncadd [#allocation6], %s209
          %s211 = sshll.u32 [#allocation7], 4
          %s212 = int_to_ptr.vmem [resolvable:$true] %s211
          %217 = dma.hbm_to_vmem [thread:$0]  %s3, 256, %s212, [#allocation6], 64, 64, 4
        $region24: #{tpu_custom_call.1} parent=11 // pred_fallthru
          _
        // Predicated region
        $region25: #{tpu_custom_call.1} parent=11 // pred_check
          %p218 = pneg %p127
        $region26: #{tpu_custom_call.1} parent=11 // pred_check_branch
          %220 = sbr.rel (%p218) target = $region28
        $region27: #{tpu_custom_call.1} parent=11 // pred_region
          _
        $region28: #{tpu_custom_call.1} parent=11 // pred_fallthru
          _
        // Predicated region
        $region29: #{tpu_custom_call.1} parent=11 // pred_check
          %p221 = pneg %p148
        $region30: #{tpu_custom_call.1} parent=11 // pred_check_branch
          %223 = sbr.rel (%p221) target = $region32
        $region31: #{tpu_custom_call.1} parent=11 // pred_region
          _
        $region32: #{tpu_custom_call.1} parent=11 // pred_fallthru
          _
      $region12: #{tpu_custom_call.1} parent=5 // pred_fallthru
        _
      %p224 = scmp.lt.s32.totalorder %s17, 2
      // Predicated region
      $region33: #{tpu_custom_call.1} parent=5 // pred_check
        %p225 = pneg %p224
      $region34: #{tpu_custom_call.1} parent=5 // pred_check_branch
        %227 = sbr.rel (%p225) target = $region36
      $region35: #{tpu_custom_call.1} parent=5 // pred_region
        // Predicated region
        $region37: #{tpu_custom_call.1} parent=35 // pred_check
          %p228 = pneg %p37
        $region38: #{tpu_custom_call.1} parent=35 // pred_check_branch
          %230 = sbr.rel (%p228) target = $region40
        $region39: #{tpu_custom_call.1} parent=35 // pred_region
          %s231 = sand.u32 %s27, 1
          %s232 = scalar_lea.sflag [#allocation4], %s231
          %s233 = sand.u32 %s27, 1
          %s234 = smul.addr %s233, 12
          %s235 = scalar_lea.vmem [#allocation3], %s234
          %s236 = smul.u32 3, %s17
          %s238 = ssub.s32 192, 192
          %239 = vsyncadd %s232, %s238
          %s240 = smul.addr %s236, 64
          %s241 = scalar_lea.hbm %s0, %s240
          %s242 = sshll.u32 %s235, 4
          %s243 = int_to_ptr.vmem [resolvable:$true] %s242
          %248 = dma.hbm_to_vmem [thread:$0]  %s241, 192, %s243, %s232, 64, 64, 4
        $region40: #{tpu_custom_call.1} parent=35 // pred_fallthru
          _
      $region36: #{tpu_custom_call.1} parent=5 // pred_fallthru
        _
      %p249 = scmp.le.s32.totalorder 1, %s17
      %p250 = scmp.lt.s32.totalorder %s17, 3
      %p251 = pnand %p249, %p250
      %p252 = pneg %p251
      // Predicated region
      $region41: #{tpu_custom_call.1} parent=5 // pred_check
        _
      $region42: #{tpu_custom_call.1} parent=5 // pred_check_branch
        %254 = sbr.rel (%p251) target = $region44
      $region43: #{tpu_custom_call.1} parent=5 // pred_region
        %s255 = ssub.s32 %s17, 1
        %s256 = sand.u32 %s30, 1
        %s257 = scalar_lea.sflag [#allocation4], %s256
        %s258 = sand.u32 %s30, 1
        %s259 = smul.addr %s258, 12
        %s260 = scalar_lea.vmem [#allocation3], %s259
        // Predicated region
        $region45: #{tpu_custom_call.1} parent=43 // pred_check
          %p261 = pneg %p43
        $region46: #{tpu_custom_call.1} parent=43 // pred_check_branch
          %263 = sbr.rel (%p261) target = $region48
        $region47: #{tpu_custom_call.1} parent=43 // pred_region
          %264 = dma.done %s257, 192
        $region48: #{tpu_custom_call.1} parent=43 // pred_fallthru
          _
        // Predicated region
        $region49: #{tpu_custom_call.1} parent=43 // pred_check
          %p265 = pneg %p64
        $region50: #{tpu_custom_call.1} parent=43 // pred_check_branch
          %267 = sbr.rel (%p265) target = $region52
        $region51: #{tpu_custom_call.1} parent=43 // pred_region
          %268 = dma.done [#allocation6], 256
        $region52: #{tpu_custom_call.1} parent=43 // pred_fallthru
          _
        // Predicated region
        $region53: #{tpu_custom_call.1} parent=43 // pred_check
          %p269 = pneg %p106
        $region54: #{tpu_custom_call.1} parent=43 // pred_check_branch
          %271 = sbr.rel (%p269) target = $region56
        $region55: #{tpu_custom_call.1} parent=43 // pred_region
          %272 = dma.done [#allocation6], 256
        $region56: #{tpu_custom_call.1} parent=43 // pred_fallthru
          _
        %s273 = sand.u32 %s30, 1
        %s274 = scalar_lea.sflag [#allocation4], %s273
        %s275 = sand.u32 %s30, 1
        %s276 = smul.addr %s275, 12
        %s277 = scalar_lea.vmem [#allocation3], %s276
        %p278 = pneg %p43
        %p279 = pneg %p40
        %p280 = pneg %p64
        %p281 = pneg %p61
        %p282 = pneg %p85
        %p283 = pneg %p82
        %p284 = pneg %p106
        %p285 = pneg %p103
        %p286 = pneg %p127
        %p287 = pneg %p124
        %p288 = pneg %p148
        %p289 = pneg %p145
        %p290 = pneg %p174
        %p291 = pneg %p171
        %s292 = smul.u32 3, %s22
        %p293 = scmp.lt.s32.totalorder %s292, 5
        %s294 = scalar_select %p293, %s292, 5
        %s295 = scalar_lea.vmem %s6, %s294
        %s296 = smul.u32 3, %s22
        %s297 = smul.u32 3, %s22
        %p298 = scmp.lt.s32.totalorder %s297, 5
        %s299 = scalar_select %p298, %s297, 5
        %s300 = scalar_lea.vmem %s6, %s299
        %s301 = smul.u32 3, %s22
        %v303 = vld [vmem:[%s260] sm:$0xf]
        %v304 = vld [vmem:[%s260 + $0x4] sm:$0xf]
        %v305 = vld [vmem:[%s260 + $0x8] sm:$0xf]
        %v306 = vld [vmem:[#allocation5] sm:$0xf]
        %v307 = vld [vmem:[#allocation5 + $0x4] sm:$0xf]
        %v308 = vld [vmem:[#allocation5 + $0x8] sm:$0xf]
        %v309 = vld [vmem:[#allocation5 + $0xc] sm:$0xf]
        %v310 = vld [vmem:[%s2] sm:$0x1]
        %v312 = vlaneseq
        %v313 = vshrl.u32 %v312, 7
        %v314 = vsub.s32 0, %v313
        %v315 = vrot.slane %v310, %v314
        %v320 = vunpack.c.l.b16 %v303
        %v321 = vunpack.c.l.b16 %v304
        %v322 = vunpack.c.l.b16 %v305
        %v323 = vpack.c.b16 %v321, %v320
        %v324 = vpack.c.b16 %v322, %v322
        %v329 = vunpack.c.l.b16 %v306
        %v330 = vunpack.c.l.b16 %v307
        %v331 = vunpack.c.l.b16 %v308
        %v332 = vunpack.c.l.b16 %v309
        %v333 = vpack.c.b16 %v330, %v329
        %v334 = vpack.c.b16 %v332, %v331
        %vm337 = vcmask 261120
        %v339 = vsel %vm337, %v323, 0
        %v342 = vsel %vm337, %v324, 0
        %344 = vmatprep.subr.bf16.mxu0 0
        %345 = vmatpush1.bf16.msra.mxu0 0
        %346 = vmatprep.subr.bf16.mxu0 0
        %347 = vmatpush1.bf16.msra.mxu0 0
        %348 = vmatprep.subr.bf16.mxu0 0
        %349 = vmatpush1.bf16.msra.mxu0 0
        %350 = vmatprep.subr.bf16.mxu0 0
        %351 = vmatpush1.bf16.msra.mxu0 0
        %352 = vmatprep.subr.bf16.mxu0 0
        %353 = vmatpush1.bf16.msra.mxu0 0
        %354 = vmatprep.subr.bf16.mxu0 0
        %355 = vmatpush1.bf16.msra.mxu0 0
        %356 = vmatprep.subr.bf16.mxu0 0
        %357 = vmatpush1.bf16.msra.mxu0 %v334
        %358 = vmatprep.subr.bf16.mxu0 0
        %359 = vmatpush1.bf16.msra.mxu0 %v333
        %360 = vmatprep.subr.bf16.mxu0 0
        %361 = vmatpush2.bf16.msra.mxu0 0
        %362 = vmatprep.subr.bf16.mxu0 0
        %363 = vmatpush2.bf16.msra.mxu0 0
        %364 = vmatprep.subr.bf16.mxu0 0
        %365 = vmatpush2.bf16.msra.mxu0 0
        %366 = vmatprep.subr.bf16.mxu0 0
        %367 = vmatpush2.bf16.msra.mxu0 0
        %368 = vmatprep.subr.bf16.mxu0 0
        %369 = vmatpush2.bf16.msra.mxu0 0
        %370 = vmatprep.subr.bf16.mxu0 0
        %371 = vmatpush2.bf16.msra.mxu0 0
        %372 = vmatprep.subr.bf16.mxu0 0
        %373 = vmatpush2.bf16.msra.mxu0 0
        %374 = vmatprep.subr.bf16.mxu0 0
        %375 = vmatpush2.bf16.msra.mxu0 0
        %376 = vmatprep.mubr.bf16.mxu0 0
        %377 = vmatmul.mubr.bf16.gmra.mxu0 %v339
        %v378 = vpop.f32.mrf.mxu0
        %v379 = vadd.f32 %v315, %v378
        %v380 = vpop.f32.mrf.mxu0
        %v381 = vpop.f32.mrf.mxu0
        %v382 = vadd.f32 %v315, %v381
        %v383 = vpop.f32.mrf.mxu0
        %384 = vmatprep.mubr.bf16.mxu0 0
        %385 = vmatmul.mubr.bf16.gmra.mxu0 %v342
        %v386 = vpop.f32.mrf.mxu0
        %v387 = vadd.f32 %v315, %v386
        %v388 = vpop.f32.mrf.mxu0
        %v389 = vpop.f32.mrf.mxu0
        %v390 = vpop.f32.mrf.mxu0
        %391 = vdwg.mxu0
        %v392 = vmax.f32 %v379, 0.0
        %v393 = vmax.f32 %v382, 0.0
        %v394 = vmax.f32 %v387, 0.0
        %v395 = vpack.c.bf16 %v393, %v392
        %v396 = vpack.c.bf16 %v394, %v394
        %v397 = vld [vmem:[#allocation7] sm:$0xf]
        %v398 = vld [vmem:[#allocation7 + $0x4] sm:$0xf]
        %v399 = vld [vmem:[#allocation7 + $0x8] sm:$0xf]
        %v400 = vld [vmem:[#allocation7 + $0xc] sm:$0xf]
        %v405 = vunpack.c.l.b16 %v397
        %v406 = vunpack.c.l.b16 %v398
        %v407 = vunpack.c.l.b16 %v399
        %v408 = vunpack.c.l.b16 %v400
        %v409 = vpack.c.b16 %v406, %v405
        %v410 = vpack.c.b16 %v408, %v407
        %v414 = vsel %vm337, %v395, 0
        %v417 = vsel %vm337, %v396, 0
        %419 = vmatprep.subr.bf16.mxu0 0
        %420 = vmatpush1.bf16.msra.mxu0 0
        %421 = vmatprep.subr.bf16.mxu0 0
        %422 = vmatpush1.bf16.msra.mxu0 0
        %423 = vmatprep.subr.bf16.mxu0 0
        %424 = vmatpush1.bf16.msra.mxu0 0
        %425 = vmatprep.subr.bf16.mxu0 0
        %426 = vmatpush1.bf16.msra.mxu0 0
        %427 = vmatprep.subr.bf16.mxu0 0
        %428 = vmatpush1.bf16.msra.mxu0 0
        %429 = vmatprep.subr.bf16.mxu0 0
        %430 = vmatpush1.bf16.msra.mxu0 0
        %431 = vmatprep.subr.bf16.mxu0 0
        %432 = vmatpush1.bf16.msra.mxu0 %v410
        %433 = vmatprep.subr.bf16.mxu0 0
        %434 = vmatpush1.bf16.msra.mxu0 %v409
        %435 = vmatprep.subr.bf16.mxu0 0
        %436 = vmatpush2.bf16.msra.mxu0 0
        %437 = vmatprep.subr.bf16.mxu0 0
        %438 = vmatpush2.bf16.msra.mxu0 0
        %439 = vmatprep.subr.bf16.mxu0 0
        %440 = vmatpush2.bf16.msra.mxu0 0
        %441 = vmatprep.subr.bf16.mxu0 0
        %442 = vmatpush2.bf16.msra.mxu0 0
        %443 = vmatprep.subr.bf16.mxu0 0
        %444 = vmatpush2.bf16.msra.mxu0 0
        %445 = vmatprep.subr.bf16.mxu0 0
        %446 = vmatpush2.bf16.msra.mxu0 0
        %447 = vmatprep.subr.bf16.mxu0 0
        %448 = vmatpush2.bf16.msra.mxu0 0
        %449 = vmatprep.subr.bf16.mxu0 0
        %450 = vmatpush2.bf16.msra.mxu0 0
        %451 = vmatprep.mubr.bf16.mxu0 0
        %452 = vmatmul.mubr.bf16.gmra.mxu0 %v414
        %v453 = vpop.f32.mrf.mxu0
        %v454 = vadd.f32 0.0, %v453
        %v455 = vpop.f32.mrf.mxu0
        %v456 = vpop.f32.mrf.mxu0
        %v457 = vadd.f32 0.0, %v456
        %v458 = vpop.f32.mrf.mxu0
        %459 = vmatprep.mubr.bf16.mxu0 0
        %460 = vmatmul.mubr.bf16.gmra.mxu0 %v417
        %v461 = vpop.f32.mrf.mxu0
        %v462 = vadd.f32 0.0, %v461
        %v463 = vpop.f32.mrf.mxu0
        %v464 = vpop.f32.mrf.mxu0
        %v465 = vpop.f32.mrf.mxu0
        %466 = vdwg.mxu0
        %v467 = vld [vmem:[%s4] sm:$0x1]
        %v469 = vlaneseq
        %v470 = vshrl.u32 %v469, 7
        %v471 = vsub.s32 0, %v470
        %v472 = vrot.slane %v467, %v471
        %v474 = vadd.f32 %v454, %v472
        %v475 = vadd.f32 %v457, %v472
        %v476 = vadd.f32 %v462, %v472
        %v477 = vpack.c.bf16 %v475, %v474
        %v478 = vpack.c.bf16 %v476, %v476
        %v481 = vunpack.c.l.b16 %v477
        %v482 = vunpack.c.h.b16 %v477
        %v483 = vunpack.c.l.b16 %v478
        %v484 = vpack.c.b16 %v481, %v481
        %v485 = vpack.c.b16 %v482, %v482
        %v486 = vpack.c.b16 %v483, %v483
        %487 = vrot.lane.b32.xlu0 %v484, 96
        %v488 = vpop.permute.xlu0 %487
        %vm489 = vcmask 64512
        %v491 = vsel %vm489, %v488, 0
        %v494 = vsel %vm489, %v484, 0
        %496 = vmatprep.subr.bf16.mxu0 0
        %497 = vmatpush1.bf16.xpose.msra.mxu0 0
        %498 = vmatprep.subr.bf16.mxu0 0
        %499 = vmatpush1.bf16.xpose.msra.mxu0 0
        %500 = vmatprep.subr.bf16.mxu0 0
        %501 = vmatpush1.bf16.xpose.msra.mxu0 0
        %502 = vmatprep.subr.bf16.mxu0 0
        %503 = vmatpush1.bf16.xpose.msra.mxu0 0
        %504 = vmatprep.subr.bf16.mxu0 0
        %505 = vmatpush1.bf16.xpose.msra.mxu0 0
        %506 = vmatprep.subr.bf16.mxu0 0
        %507 = vmatpush1.bf16.xpose.msra.mxu0 0
        %508 = vmatprep.subr.bf16.mxu0 0
        %509 = vmatpush1.bf16.xpose.msra.mxu0 0
        %510 = vmatprep.subr.bf16.mxu0 0
        %511 = vmatpush1.bf16.xpose.msra.mxu0 %v494
        %512 = vmatprep.subr.bf16.mxu0 0
        %513 = vmatpush2.bf16.xpose.msra.mxu0 0
        %514 = vmatprep.subr.bf16.mxu0 0
        %515 = vmatpush2.bf16.xpose.msra.mxu0 0
        %516 = vmatprep.subr.bf16.mxu0 0
        %517 = vmatpush2.bf16.xpose.msra.mxu0 0
        %518 = vmatprep.subr.bf16.mxu0 0
        %519 = vmatpush2.bf16.xpose.msra.mxu0 0
        %520 = vmatprep.subr.bf16.mxu0 0
        %521 = vmatpush2.bf16.xpose.msra.mxu0 0
        %522 = vmatprep.subr.bf16.mxu0 0
        %523 = vmatpush2.bf16.xpose.msra.mxu0 0
        %524 = vmatprep.subr.bf16.mxu0 0
        %525 = vmatpush2.bf16.xpose.msra.mxu0 0
        %526 = vmatprep.subr.bf16.mxu0 0
        %527 = vmatpush2.bf16.xpose.msra.mxu0 0
        %528 = vmatprep.mubr.bf16.mxu0 0
        %529 = vmatmul.mubr.bf16.gmra.mxu0 %v491
        %v530 = vpop.f32.mrf.mxu0
        %v531 = vadd.f32 0.0, %v530
        %v532 = vpop.f32.mrf.mxu0
        %v533 = vpop.f32.mrf.mxu0
        %v534 = vpop.f32.mrf.mxu0
        %535 = vdwg.mxu0
        %536 = vrot.lane.b32.xlu0 %v485, 96
        %v537 = vpop.permute.xlu0 %536
        %v539 = vsel %vm489, %v537, 0
        %v542 = vsel %vm489, %v485, 0
        %544 = vmatprep.subr.bf16.mxu0 0
        %545 = vmatpush1.bf16.xpose.msra.mxu0 0
        %546 = vmatprep.subr.bf16.mxu0 0
        %547 = vmatpush1.bf16.xpose.msra.mxu0 0
        %548 = vmatprep.subr.bf16.mxu0 0
        %549 = vmatpush1.bf16.xpose.msra.mxu0 0
        %550 = vmatprep.subr.bf16.mxu0 0
        %551 = vmatpush1.bf16.xpose.msra.mxu0 0
        %552 = vmatprep.subr.bf16.mxu0 0
        %553 = vmatpush1.bf16.xpose.msra.mxu0 0
        %554 = vmatprep.subr.bf16.mxu0 0
        %555 = vmatpush1.bf16.xpose.msra.mxu0 0
        %556 = vmatprep.subr.bf16.mxu0 0
        %557 = vmatpush1.bf16.xpose.msra.mxu0 0
        %558 = vmatprep.subr.bf16.mxu0 0
        %559 = vmatpush1.bf16.xpose.msra.mxu0 %v542
        %560 = vmatprep.subr.bf16.mxu0 0
        %561 = vmatpush2.bf16.xpose.msra.mxu0 0
        %562 = vmatprep.subr.bf16.mxu0 0
        %563 = vmatpush2.bf16.xpose.msra.mxu0 0
        %564 = vmatprep.subr.bf16.mxu0 0
        %565 = vmatpush2.bf16.xpose.msra.mxu0 0
        %566 = vmatprep.subr.bf16.mxu0 0
        %567 = vmatpush2.bf16.xpose.msra.mxu0 0
        %568 = vmatprep.subr.bf16.mxu0 0
        %569 = vmatpush2.bf16.xpose.msra.mxu0 0
        %570 = vmatprep.subr.bf16.mxu0 0
        %571 = vmatpush2.bf16.xpose.msra.mxu0 0
        %572 = vmatprep.subr.bf16.mxu0 0
        %573 = vmatpush2.bf16.xpose.msra.mxu0 0
        %574 = vmatprep.subr.bf16.mxu0 0
        %575 = vmatpush2.bf16.xpose.msra.mxu0 0
        %576 = vmatprep.mubr.bf16.mxu0 0
        %577 = vmatmul.mubr.bf16.gmra.mxu0 %v539
        %v578 = vpop.f32.mrf.mxu0
        %v579 = vadd.f32 0.0, %v578
        %v580 = vpop.f32.mrf.mxu0
        %v581 = vpop.f32.mrf.mxu0
        %v582 = vpop.f32.mrf.mxu0
        %583 = vdwg.mxu0
        %584 = vrot.lane.b32.xlu0 %v486, 96
        %v585 = vpop.permute.xlu0 %584
        %v587 = vsel %vm489, %v585, 0
        %v590 = vsel %vm489, %v486, 0
        %592 = vmatprep.subr.bf16.mxu0 0
        %593 = vmatpush1.bf16.xpose.msra.mxu0 0
        %594 = vmatprep.subr.bf16.mxu0 0
        %595 = vmatpush1.bf16.xpose.msra.mxu0 0
        %596 = vmatprep.subr.bf16.mxu0 0
        %597 = vmatpush1.bf16.xpose.msra.mxu0 0
        %598 = vmatprep.subr.bf16.mxu0 0
        %599 = vmatpush1.bf16.xpose.msra.mxu0 0
        %600 = vmatprep.subr.bf16.mxu0 0
        %601 = vmatpush1.bf16.xpose.msra.mxu0 0
        %602 = vmatprep.subr.bf16.mxu0 0
        %603 = vmatpush1.bf16.xpose.msra.mxu0 0
        %604 = vmatprep.subr.bf16.mxu0 0
        %605 = vmatpush1.bf16.xpose.msra.mxu0 0
        %606 = vmatprep.subr.bf16.mxu0 0
        %607 = vmatpush1.bf16.xpose.msra.mxu0 %v590
        %608 = vmatprep.subr.bf16.mxu0 0
        %609 = vmatpush2.bf16.xpose.msra.mxu0 0
        %610 = vmatprep.subr.bf16.mxu0 0
        %611 = vmatpush2.bf16.xpose.msra.mxu0 0
        %612 = vmatprep.subr.bf16.mxu0 0
        %613 = vmatpush2.bf16.xpose.msra.mxu0 0
        %614 = vmatprep.subr.bf16.mxu0 0
        %615 = vmatpush2.bf16.xpose.msra.mxu0 0
        %616 = vmatprep.subr.bf16.mxu0 0
        %617 = vmatpush2.bf16.xpose.msra.mxu0 0
        %618 = vmatprep.subr.bf16.mxu0 0
        %619 = vmatpush2.bf16.xpose.msra.mxu0 0
        %620 = vmatprep.subr.bf16.mxu0 0
        %621 = vmatpush2.bf16.xpose.msra.mxu0 0
        %622 = vmatprep.subr.bf16.mxu0 0
        %623 = vmatpush2.bf16.xpose.msra.mxu0 0
        %624 = vmatprep.mubr.bf16.mxu0 0
        %625 = vmatmul.mubr.bf16.gmra.mxu0 %v587
        %v626 = vpop.f32.mrf.mxu0
        %v627 = vadd.f32 0.0, %v626
        %v628 = vpop.f32.mrf.mxu0
        %v629 = vpop.f32.mrf.mxu0
        %v630 = vpop.f32.mrf.mxu0
        %631 = vdwg.mxu0
        %v632 = vsel %vm489, %v531, -inf
        %v633 = vrot.slane %v632, 4
        %v634 = vmax.f32 %v632, %v633
        %v635 = vrot.slane %v634, 2
        %v636 = vmax.f32 %v634, %v635
        %v637 = vrot.slane %v636, 1
        %v638 = vmax.f32 %v636, %v637
        %v639 = vsel %vm489, %v579, -inf
        %v640 = vrot.slane %v639, 4
        %v641 = vmax.f32 %v639, %v640
        %v642 = vrot.slane %v641, 2
        %v643 = vmax.f32 %v641, %v642
        %v644 = vrot.slane %v643, 1
        %v645 = vmax.f32 %v643, %v644
        %v646 = vsel %vm489, %v627, -inf
        %v647 = vrot.slane %v646, 4
        %v648 = vmax.f32 %v646, %v647
        %v649 = vrot.slane %v648, 2
        %v650 = vmax.f32 %v648, %v649
        %v651 = vrot.slane %v650, 1
        %v652 = vmax.f32 %v650, %v651
        %v653 = vsub.f32 %v531, %v638
        %v654 = vsub.f32 %v579, %v645
        %v655 = vsub.f32 %v627, %v652
        %v656 = vmul.f32 %v653, 1.442695
        %v657 = vpow.pop %v656
        %v658 = vmul.f32 %v654, 1.442695
        %v659 = vpow.pop %v658
        %v660 = vmul.f32 %v655, 1.442695
        %v661 = vpow.pop %v660
        %v662 = vsel %vm489, %v657, 0.0
        %v663 = vrot.slane %v662, 4
        %v664 = vadd.f32 %v662, %v663
        %v665 = vrot.slane %v664, 2
        %v666 = vadd.f32 %v664, %v665
        %v667 = vrot.slane %v666, 1
        %v668 = vadd.f32 %v666, %v667
        %v669 = vsel %vm489, %v659, 0.0
        %v670 = vrot.slane %v669, 4
        %v671 = vadd.f32 %v669, %v670
        %v672 = vrot.slane %v671, 2
        %v673 = vadd.f32 %v671, %v672
        %v674 = vrot.slane %v673, 1
        %v675 = vadd.f32 %v673, %v674
        %v676 = vsel %vm489, %v661, 0.0
        %v677 = vrot.slane %v676, 4
        %v678 = vadd.f32 %v676, %v677
        %v679 = vrot.slane %v678, 2
        %v680 = vadd.f32 %v678, %v679
        %v681 = vrot.slane %v680, 1
        %v682 = vadd.f32 %v680, %v681
        %v683 = vrcp.pop %v668
        %v684 = vrcp.pop %v675
        %v685 = vrcp.pop %v682
        %v686 = vmul.f32 %v657, %v683
        %v687 = vmul.f32 %v659, %v684
        %v688 = vmul.f32 %v661, %v685
        %v689 = vsel %vm489, %v686, 0.0
        %690 = vadd.xlane.f32.xlu0 %v689
        %v691 = vpop.xlane.xlu0 %690
        %v692 = vsel %vm489, %v687, 0.0
        %693 = vadd.xlane.f32.xlu0 %v692
        %v694 = vpop.xlane.xlu0 %693
        %v695 = vsel %vm489, %v688, 0.0
        %696 = vadd.xlane.f32.xlu0 %v695
        %v697 = vpop.xlane.xlu0 %696
        %v698 = vmul.f32 %v691, %v454
        %v699 = vmul.f32 %v694, %v457
        %v700 = vmul.f32 %v697, %v462
        %v701 = vadd.f32 %v698, 0.0
        %v702 = vadd.f32 %v699, 0.0
        %v703 = vadd.f32 %v700, 0.0
        %704 = vrot.lane.b32.xlu0 %v484, 88
        %v705 = vpop.permute.xlu0 %704
        %706 = vrot.lane.b32.xlu0 %v484, 120
        %v707 = vpop.permute.xlu0 %706
        %v709 = vsel %vm489, %v705, 0
        %v712 = vsel %vm489, %v707, 0
        %714 = vmatprep.subr.bf16.mxu0 0
        %715 = vmatpush1.bf16.xpose.msra.mxu0 0
        %716 = vmatprep.subr.bf16.mxu0 0
        %717 = vmatpush1.bf16.xpose.msra.mxu0 0
        %718 = vmatprep.subr.bf16.mxu0 0
        %719 = vmatpush1.bf16.xpose.msra.mxu0 0
        %720 = vmatprep.subr.bf16.mxu0 0
        %721 = vmatpush1.bf16.xpose.msra.mxu0 0
        %722 = vmatprep.subr.bf16.mxu0 0
        %723 = vmatpush1.bf16.xpose.msra.mxu0 0
        %724 = vmatprep.subr.bf16.mxu0 0
        %725 = vmatpush1.bf16.xpose.msra.mxu0 0
        %726 = vmatprep.subr.bf16.mxu0 0
        %727 = vmatpush1.bf16.xpose.msra.mxu0 0
        %728 = vmatprep.subr.bf16.mxu0 0
        %729 = vmatpush1.bf16.xpose.msra.mxu0 %v712
        %730 = vmatprep.subr.bf16.mxu0 0
        %731 = vmatpush2.bf16.xpose.msra.mxu0 0
        %732 = vmatprep.subr.bf16.mxu0 0
        %733 = vmatpush2.bf16.xpose.msra.mxu0 0
        %734 = vmatprep.subr.bf16.mxu0 0
        %735 = vmatpush2.bf16.xpose.msra.mxu0 0
        %736 = vmatprep.subr.bf16.mxu0 0
        %737 = vmatpush2.bf16.xpose.msra.mxu0 0
        %738 = vmatprep.subr.bf16.mxu0 0
        %739 = vmatpush2.bf16.xpose.msra.mxu0 0
        %740 = vmatprep.subr.bf16.mxu0 0
        %741 = vmatpush2.bf16.xpose.msra.mxu0 0
        %742 = vmatprep.subr.bf16.mxu0 0
        %743 = vmatpush2.bf16.xpose.msra.mxu0 0
        %744 = vmatprep.subr.bf16.mxu0 0
        %745 = vmatpush2.bf16.xpose.msra.mxu0 0
        %746 = vmatprep.mubr.bf16.mxu0 0
        %747 = vmatmul.mubr.bf16.gmra.mxu0 %v709
        %v748 = vpop.f32.mrf.mxu0
        %v749 = vadd.f32 0.0, %v748
        %v750 = vpop.f32.mrf.mxu0
        %v751 = vpop.f32.mrf.mxu0
        %v752 = vpop.f32.mrf.mxu0
        %753 = vdwg.mxu0
        %754 = vrot.lane.b32.xlu0 %v485, 88
        %v755 = vpop.permute.xlu0 %754
        %756 = vrot.lane.b32.xlu0 %v485, 120
        %v757 = vpop.permute.xlu0 %756
        %v759 = vsel %vm489, %v755, 0
        %v762 = vsel %vm489, %v757, 0
        %764 = vmatprep.subr.bf16.mxu0 0
        %765 = vmatpush1.bf16.xpose.msra.mxu0 0
        %766 = vmatprep.subr.bf16.mxu0 0
        %767 = vmatpush1.bf16.xpose.msra.mxu0 0
        %768 = vmatprep.subr.bf16.mxu0 0
        %769 = vmatpush1.bf16.xpose.msra.mxu0 0
        %770 = vmatprep.subr.bf16.mxu0 0
        %771 = vmatpush1.bf16.xpose.msra.mxu0 0
        %772 = vmatprep.subr.bf16.mxu0 0
        %773 = vmatpush1.bf16.xpose.msra.mxu0 0
        %774 = vmatprep.subr.bf16.mxu0 0
        %775 = vmatpush1.bf16.xpose.msra.mxu0 0
        %776 = vmatprep.subr.bf16.mxu0 0
        %777 = vmatpush1.bf16.xpose.msra.mxu0 0
        %778 = vmatprep.subr.bf16.mxu0 0
        %779 = vmatpush1.bf16.xpose.msra.mxu0 %v762
        %780 = vmatprep.subr.bf16.mxu0 0
        %781 = vmatpush2.bf16.xpose.msra.mxu0 0
        %782 = vmatprep.subr.bf16.mxu0 0
        %783 = vmatpush2.bf16.xpose.msra.mxu0 0
        %784 = vmatprep.subr.bf16.mxu0 0
        %785 = vmatpush2.bf16.xpose.msra.mxu0 0
        %786 = vmatprep.subr.bf16.mxu0 0
        %787 = vmatpush2.bf16.xpose.msra.mxu0 0
        %788 = vmatprep.subr.bf16.mxu0 0
        %789 = vmatpush2.bf16.xpose.msra.mxu0 0
        %790 = vmatprep.subr.bf16.mxu0 0
        %791 = vmatpush2.bf16.xpose.msra.mxu0 0
        %792 = vmatprep.subr.bf16.mxu0 0
        %793 = vmatpush2.bf16.xpose.msra.mxu0 0
        %794 = vmatprep.subr.bf16.mxu0 0
        %795 = vmatpush2.bf16.xpose.msra.mxu0 0
        %796 = vmatprep.mubr.bf16.mxu0 0
        %797 = vmatmul.mubr.bf16.gmra.mxu0 %v759
        %v798 = vpop.f32.mrf.mxu0
        %v799 = vadd.f32 0.0, %v798
        %v800 = vpop.f32.mrf.mxu0
        %v801 = vpop.f32.mrf.mxu0
        %v802 = vpop.f32.mrf.mxu0
        %803 = vdwg.mxu0
        %804 = vrot.lane.b32.xlu0 %v486, 88
        %v805 = vpop.permute.xlu0 %804
        %806 = vrot.lane.b32.xlu0 %v486, 120
        %v807 = vpop.permute.xlu0 %806
        %v809 = vsel %vm489, %v805, 0
        %v812 = vsel %vm489, %v807, 0
        %814 = vmatprep.subr.bf16.mxu0 0
        %815 = vmatpush1.bf16.xpose.msra.mxu0 0
        %816 = vmatprep.subr.bf16.mxu0 0
        %817 = vmatpush1.bf16.xpose.msra.mxu0 0
        %818 = vmatprep.subr.bf16.mxu0 0
        %819 = vmatpush1.bf16.xpose.msra.mxu0 0
        %820 = vmatprep.subr.bf16.mxu0 0
        %821 = vmatpush1.bf16.xpose.msra.mxu0 0
        %822 = vmatprep.subr.bf16.mxu0 0
        %823 = vmatpush1.bf16.xpose.msra.mxu0 0
        %824 = vmatprep.subr.bf16.mxu0 0
        %825 = vmatpush1.bf16.xpose.msra.mxu0 0
        %826 = vmatprep.subr.bf16.mxu0 0
        %827 = vmatpush1.bf16.xpose.msra.mxu0 0
        %828 = vmatprep.subr.bf16.mxu0 0
        %829 = vmatpush1.bf16.xpose.msra.mxu0 %v812
        %830 = vmatprep.subr.bf16.mxu0 0
        %831 = vmatpush2.bf16.xpose.msra.mxu0 0
        %832 = vmatprep.subr.bf16.mxu0 0
        %833 = vmatpush2.bf16.xpose.msra.mxu0 0
        %834 = vmatprep.subr.bf16.mxu0 0
        %835 = vmatpush2.bf16.xpose.msra.mxu0 0
        %836 = vmatprep.subr.bf16.mxu0 0
        %837 = vmatpush2.bf16.xpose.msra.mxu0 0
        %838 = vmatprep.subr.bf16.mxu0 0
        %839 = vmatpush2.bf16.xpose.msra.mxu0 0
        %840 = vmatprep.subr.bf16.mxu0 0
        %841 = vmatpush2.bf16.xpose.msra.mxu0 0
        %842 = vmatprep.subr.bf16.mxu0 0
        %843 = vmatpush2.bf16.xpose.msra.mxu0 0
        %844 = vmatprep.subr.bf16.mxu0 0
        %845 = vmatpush2.bf16.xpose.msra.mxu0 0
        %846 = vmatprep.mubr.bf16.mxu0 0
        %847 = vmatmul.mubr.bf16.gmra.mxu0 %v809
        %v848 = vpop.f32.mrf.mxu0
        %v849 = vadd.f32 0.0, %v848
        %v850 = vpop.f32.mrf.mxu0
        %v851 = vpop.f32.mrf.mxu0
        %v852 = vpop.f32.mrf.mxu0
        %853 = vdwg.mxu0
        %v854 = vsel %vm489, %v749, -inf
        %v855 = vrot.slane %v854, 4
        %v856 = vmax.f32 %v854, %v855
        %v857 = vrot.slane %v856, 2
        %v858 = vmax.f32 %v856, %v857
        %v859 = vrot.slane %v858, 1
        %v860 = vmax.f32 %v858, %v859
        %v861 = vsel %vm489, %v799, -inf
        %v862 = vrot.slane %v861, 4
        %v863 = vmax.f32 %v861, %v862
        %v864 = vrot.slane %v863, 2
        %v865 = vmax.f32 %v863, %v864
        %v866 = vrot.slane %v865, 1
        %v867 = vmax.f32 %v865, %v866
        %v868 = vsel %vm489, %v849, -inf
        %v869 = vrot.slane %v868, 4
        %v870 = vmax.f32 %v868, %v869
        %v871 = vrot.slane %v870, 2
        %v872 = vmax.f32 %v870, %v871
        %v873 = vrot.slane %v872, 1
        %v874 = vmax.f32 %v872, %v873
        %v875 = vsub.f32 %v749, %v860
        %v876 = vsub.f32 %v799, %v867
        %v877 = vsub.f32 %v849, %v874
        %v878 = vmul.f32 %v875, 1.442695
        %v879 = vpow.pop %v878
        %v880 = vmul.f32 %v876, 1.442695
        %v881 = vpow.pop %v880
        %v882 = vmul.f32 %v877, 1.442695
        %v883 = vpow.pop %v882
        %v884 = vsel %vm489, %v879, 0.0
        %v885 = vrot.slane %v884, 4
        %v886 = vadd.f32 %v884, %v885
        %v887 = vrot.slane %v886, 2
        %v888 = vadd.f32 %v886, %v887
        %v889 = vrot.slane %v888, 1
        %v890 = vadd.f32 %v888, %v889
        %v891 = vsel %vm489, %v881, 0.0
        %v892 = vrot.slane %v891, 4
        %v893 = vadd.f32 %v891, %v892
        %v894 = vrot.slane %v893, 2
        %v895 = vadd.f32 %v893, %v894
        %v896 = vrot.slane %v895, 1
        %v897 = vadd.f32 %v895, %v896
        %v898 = vsel %vm489, %v883, 0.0
        %v899 = vrot.slane %v898, 4
        %v900 = vadd.f32 %v898, %v899
        %v901 = vrot.slane %v900, 2
        %v902 = vadd.f32 %v900, %v901
        %v903 = vrot.slane %v902, 1
        %v904 = vadd.f32 %v902, %v903
        %v905 = vrcp.pop %v890
        %v906 = vrcp.pop %v897
        %v907 = vrcp.pop %v904
        %v908 = vmul.f32 %v879, %v905
        %v909 = vmul.f32 %v881, %v906
        %v910 = vmul.f32 %v883, %v907
        %v911 = vsel %vm489, %v908, 0.0
        %912 = vadd.xlane.f32.xlu0 %v911
        %v913 = vpop.xlane.xlu0 %912
        %v914 = vsel %vm489, %v909, 0.0
        %915 = vadd.xlane.f32.xlu0 %v914
        %v916 = vpop.xlane.xlu0 %915
        %v917 = vsel %vm489, %v910, 0.0
        %918 = vadd.xlane.f32.xlu0 %v917
        %v919 = vpop.xlane.xlu0 %918
        %v920 = vmul.f32 %v913, %v454
        %v921 = vmul.f32 %v916, %v457
        %v922 = vmul.f32 %v919, %v462
        %926 = vrot.lane.b32.xlu0 %v920, 127
        %v927 = vpop.permute.xlu0 %926
        %928 = vrot.lane.b32.xlu0 %v921, 127
        %v929 = vpop.permute.xlu0 %928
        %930 = vrot.lane.b32.xlu0 %v922, 127
        %v931 = vpop.permute.xlu0 %930
        %v935 = vadd.f32 %v701, %v927
        %v936 = vadd.f32 %v702, %v929
        %v937 = vadd.f32 %v703, %v931
        %938 = vrot.lane.b32.xlu0 %v484, 80
        %v939 = vpop.permute.xlu0 %938
        %940 = vrot.lane.b32.xlu0 %v484, 112
        %v941 = vpop.permute.xlu0 %940
        %v943 = vsel %vm489, %v939, 0
        %v946 = vsel %vm489, %v941, 0
        %948 = vmatprep.subr.bf16.mxu0 0
        %949 = vmatpush1.bf16.xpose.msra.mxu0 0
        %950 = vmatprep.subr.bf16.mxu0 0
        %951 = vmatpush1.bf16.xpose.msra.mxu0 0
        %952 = vmatprep.subr.bf16.mxu0 0
        %953 = vmatpush1.bf16.xpose.msra.mxu0 0
        %954 = vmatprep.subr.bf16.mxu0 0
        %955 = vmatpush1.bf16.xpose.msra.mxu0 0
        %956 = vmatprep.subr.bf16.mxu0 0
        %957 = vmatpush1.bf16.xpose.msra.mxu0 0
        %958 = vmatprep.subr.bf16.mxu0 0
        %959 = vmatpush1.bf16.xpose.msra.mxu0 0
        %960 = vmatprep.subr.bf16.mxu0 0
        %961 = vmatpush1.bf16.xpose.msra.mxu0 0
        %962 = vmatprep.subr.bf16.mxu0 0
        %963 = vmatpush1.bf16.xpose.msra.mxu0 %v946
        %964 = vmatprep.subr.bf16.mxu0 0
        %965 = vmatpush2.bf16.xpose.msra.mxu0 0
        %966 = vmatprep.subr.bf16.mxu0 0
        %967 = vmatpush2.bf16.xpose.msra.mxu0 0
        %968 = vmatprep.subr.bf16.mxu0 0
        %969 = vmatpush2.bf16.xpose.msra.mxu0 0
        %970 = vmatprep.subr.bf16.mxu0 0
        %971 = vmatpush2.bf16.xpose.msra.mxu0 0
        %972 = vmatprep.subr.bf16.mxu0 0
        %973 = vmatpush2.bf16.xpose.msra.mxu0 0
        %974 = vmatprep.subr.bf16.mxu0 0
        %975 = vmatpush2.bf16.xpose.msra.mxu0 0
        %976 = vmatprep.subr.bf16.mxu0 0
        %977 = vmatpush2.bf16.xpose.msra.mxu0 0
        %978 = vmatprep.subr.bf16.mxu0 0
        %979 = vmatpush2.bf16.xpose.msra.mxu0 0
        %980 = vmatprep.mubr.bf16.mxu0 0
        %981 = vmatmul.mubr.bf16.gmra.mxu0 %v943
        %v982 = vpop.f32.mrf.mxu0
        %v983 = vadd.f32 0.0, %v982
        %v984 = vpop.f32.mrf.mxu0
        %v985 = vpop.f32.mrf.mxu0
        %v986 = vpop.f32.mrf.mxu0
        %987 = vdwg.mxu0
        %988 = vrot.lane.b32.xlu0 %v485, 80
        %v989 = vpop.permute.xlu0 %988
        %990 = vrot.lane.b32.xlu0 %v485, 112
        %v991 = vpop.permute.xlu0 %990
        %v993 = vsel %vm489, %v989, 0
        %v996 = vsel %vm489, %v991, 0
        %998 = vmatprep.subr.bf16.mxu0 0
        %999 = vmatpush1.bf16.xpose.msra.mxu0 0
        %1000 = vmatprep.subr.bf16.mxu0 0
        %1001 = vmatpush1.bf16.xpose.msra.mxu0 0
        %1002 = vmatprep.subr.bf16.mxu0 0
        %1003 = vmatpush1.bf16.xpose.msra.mxu0 0
        %1004 = vmatprep.subr.bf16.mxu0 0
        %1005 = vmatpush1.bf16.xpose.msra.mxu0 0
        %1006 = vmatprep.subr.bf16.mxu0 0
        %1007 = vmatpush1.bf16.xpose.msra.mxu0 0
        %1008 = vmatprep.subr.bf16.mxu0 0
        %1009 = vmatpush1.bf16.xpose.msra.mxu0 0
        %1010 = vmatprep.subr.bf16.mxu0 0
        %1011 = vmatpush1.bf16.xpose.msra.mxu0 0
        %1012 = vmatprep.subr.bf16.mxu0 0
        %1013 = vmatpush1.bf16.xpose.msra.mxu0 %v996
        %1014 = vmatprep.subr.bf16.mxu0 0
        %1015 = vmatpush2.bf16.xpose.msra.mxu0 0
        %1016 = vmatprep.subr.bf16.mxu0 0
        %1017 = vmatpush2.bf16.xpose.msra.mxu0 0
        %1018 = vmatprep.subr.bf16.mxu0 0
        %1019 = vmatpush2.bf16.xpose.msra.mxu0 0
        %1020 = vmatprep.subr.bf16.mxu0 0
        %1021 = vmatpush2.bf16.xpose.msra.mxu0 0
        %1022 = vmatprep.subr.bf16.mxu0 0
        %1023 = vmatpush2.bf16.xpose.msra.mxu0 0
        %1024 = vmatprep.subr.bf16.mxu0 0
        %1025 = vmatpush2.bf16.xpose.msra.mxu0 0
        %1026 = vmatprep.subr.bf16.mxu0 0
        %1027 = vmatpush2.bf16.xpose.msra.mxu0 0
        %1028 = vmatprep.subr.bf16.mxu0 0
        %1029 = vmatpush2.bf16.xpose.msra.mxu0 0
        %1030 = vmatprep.mubr.bf16.mxu0 0
        %1031 = vmatmul.mubr.bf16.gmra.mxu0 %v993
        %v1032 = vpop.f32.mrf.mxu0
        %v1033 = vadd.f32 0.0, %v1032
        %v1034 = vpop.f32.mrf.mxu0
        %v1035 = vpop.f32.mrf.mxu0
        %v1036 = vpop.f32.mrf.mxu0
        %1037 = vdwg.mxu0
        %1038 = vrot.lane.b32.xlu0 %v486, 80
        %v1039 = vpop.permute.xlu0 %1038
        %1040 = vrot.lane.b32.xlu0 %v486, 112
        %v1041 = vpop.permute.xlu0 %1040
        %v1043 = vsel %vm489, %v1039, 0
        %v1046 = vsel %vm489, %v1041, 0
        %1048 = vmatprep.subr.bf16.mxu0 0
        %1049 = vmatpush1.bf16.xpose.msra.mxu0 0
        %1050 = vmatprep.subr.bf16.mxu0 0
        %1051 = vmatpush1.bf16.xpose.msra.mxu0 0
        %1052 = vmatprep.subr.bf16.mxu0 0
        %1053 = vmatpush1.bf16.xpose.msra.mxu0 0
        %1054 = vmatprep.subr.bf16.mxu0 0
        %1055 = vmatpush1.bf16.xpose.msra.mxu0 0
        %1056 = vmatprep.subr.bf16.mxu0 0
        %1057 = vmatpush1.bf16.xpose.msra.mxu0 0
        %1058 = vmatprep.subr.bf16.mxu0 0
        %1059 = vmatpush1.bf16.xpose.msra.mxu0 0
        %1060 = vmatprep.subr.bf16.mxu0 0
        %1061 = vmatpush1.bf16.xpose.msra.mxu0 0
        %1062 = vmatprep.subr.bf16.mxu0 0
        %1063 = vmatpush1.bf16.xpose.msra.mxu0 %v1046
        %1064 = vmatprep.subr.bf16.mxu0 0
        %1065 = vmatpush2.bf16.xpose.msra.mxu0 0
        %1066 = vmatprep.subr.bf16.mxu0 0
        %1067 = vmatpush2.bf16.xpose.msra.mxu0 0
        %1068 = vmatprep.subr.bf16.mxu0 0
        %1069 = vmatpush2.bf16.xpose.msra.mxu0 0
        %1070 = vmatprep.subr.bf16.mxu0 0
        %1071 = vmatpush2.bf16.xpose.msra.mxu0 0
        %1072 = vmatprep.subr.bf16.mxu0 0
        %1073 = vmatpush2.bf16.xpose.msra.mxu0 0
        %1074 = vmatprep.subr.bf16.mxu0 0
        %1075 = vmatpush2.bf16.xpose.msra.mxu0 0
        %1076 = vmatprep.subr.bf16.mxu0 0
        %1077 = vmatpush2.bf16.xpose.msra.mxu0 0
        %1078 = vmatprep.subr.bf16.mxu0 0
        %1079 = vmatpush2.bf16.xpose.msra.mxu0 0
        %1080 = vmatprep.mubr.bf16.mxu0 0
        %1081 = vmatmul.mubr.bf16.gmra.mxu0 %v1043
        %v1082 = vpop.f32.mrf.mxu0
        %v1083 = vadd.f32 0.0, %v1082
        %v1084 = vpop.f32.mrf.mxu0
        %v1085 = vpop.f32.mrf.mxu0
        %v1086 = vpop.f32.mrf.mxu0
        %1087 = vdwg.mxu0
        %v1088 = vsel %vm489, %v983, -inf
        %v1089 = vrot.slane %v1088, 4
        %v1090 = vmax.f32 %v1088, %v1089
        %v1091 = vrot.slane %v1090, 2
        %v1092 = vmax.f32 %v1090, %v1091
        %v1093 = vrot.slane %v1092, 1
        %v1094 = vmax.f32 %v1092, %v1093
        %v1095 = vsel %vm489, %v1033, -inf
        %v1096 = vrot.slane %v1095, 4
        %v1097 = vmax.f32 %v1095, %v1096
        %v1098 = vrot.slane %v1097, 2
        %v1099 = vmax.f32 %v1097, %v1098
        %v1100 = vrot.slane %v1099, 1
        %v1101 = vmax.f32 %v1099, %v1100
        %v1102 = vsel %vm489, %v1083, -inf
        %v1103 = vrot.slane %v1102, 4
        %v1104 = vmax.f32 %v1102, %v1103
        %v1105 = vrot.slane %v1104, 2
        %v1106 = vmax.f32 %v1104, %v1105
        %v1107 = vrot.slane %v1106, 1
        %v1108 = vmax.f32 %v1106, %v1107
        %v1109 = vsub.f32 %v983, %v1094
        %v1110 = vsub.f32 %v1033, %v1101
        %v1111 = vsub.f32 %v1083, %v1108
        %v1112 = vmul.f32 %v1109, 1.442695
        %v1113 = vpow.pop %v1112
        %v1114 = vmul.f32 %v1110, 1.442695
        %v1115 = vpow.pop %v1114
        %v1116 = vmul.f32 %v1111, 1.442695
        %v1117 = vpow.pop %v1116
        %v1118 = vsel %vm489, %v1113, 0.0
        %v1119 = vrot.slane %v1118, 4
        %v1120 = vadd.f32 %v1118, %v1119
        %v1121 = vrot.slane %v1120, 2
        %v1122 = vadd.f32 %v1120, %v1121
        %v1123 = vrot.slane %v1122, 1
        %v1124 = vadd.f32 %v1122, %v1123
        %v1125 = vsel %vm489, %v1115, 0.0
        %v1126 = vrot.slane %v1125, 4
        %v1127 = vadd.f32 %v1125, %v1126
        %v1128 = vrot.slane %v1127, 2
        %v1129 = vadd.f32 %v1127, %v1128
        %v1130 = vrot.slane %v1129, 1
        %v1131 = vadd.f32 %v1129, %v1130
        %v1132 = vsel %vm489, %v1117, 0.0
        %v1133 = vrot.slane %v1132, 4
        %v1134 = vadd.f32 %v1132, %v1133
        %v1135 = vrot.slane %v1134, 2
        %v1136 = vadd.f32 %v1134, %v1135
        %v1137 = vrot.slane %v1136, 1
        %v1138 = vadd.f32 %v1136, %v1137
        %v1139 = vrcp.pop %v1124
        %v1140 = vrcp.pop %v1131
        %v1141 = vrcp.pop %v1138
        %v1142 = vmul.f32 %v1113, %v1139
        %v1143 = vmul.f32 %v1115, %v1140
        %v1144 = vmul.f32 %v1117, %v1141
        %v1145 = vsel %vm489, %v1142, 0.0
        %1146 = vadd.xlane.f32.xlu0 %v1145
        %v1147 = vpop.xlane.xlu0 %1146
        %v1148 = vsel %vm489, %v1143, 0.0
        %1149 = vadd.xlane.f32.xlu0 %v1148
        %v1150 = vpop.xlane.xlu0 %1149
        %v1151 = vsel %vm489, %v1144, 0.0
        %1152 = vadd.xlane.f32.xlu0 %v1151
        %v1153 = vpop.xlane.xlu0 %1152
        %v1154 = vmul.f32 %v1147, %v454
        %v1155 = vmul.f32 %v1150, %v457
        %v1156 = vmul.f32 %v1153, %v462
        %1160 = vrot.lane.b32.xlu0 %v1154, 126
        %v1161 = vpop.permute.xlu0 %1160
        %1162 = vrot.lane.b32.xlu0 %v1155, 126
        %v1163 = vpop.permute.xlu0 %1162
        %1164 = vrot.lane.b32.xlu0 %v1156, 126
        %v1165 = vpop.permute.xlu0 %1164
        %v1169 = vadd.f32 %v935, %v1161
        %v1170 = vadd.f32 %v936, %v1163
        %v1171 = vadd.f32 %v937, %v1165
        %1172 = vrot.lane.b32.xlu0 %v484, 72
        %v1173 = vpop.permute.xlu0 %1172
        %1174 = vrot.lane.b32.xlu0 %v484, 104
        %v1175 = vpop.permute.xlu0 %1174
        %v1177 = vsel %vm489, %v1173, 0
        %v1180 = vsel %vm489, %v1175, 0
        %1182 = vmatprep.subr.bf16.mxu0 0
        %1183 = vmatpush1.bf16.xpose.msra.mxu0 0
        %1184 = vmatprep.subr.bf16.mxu0 0
        %1185 = vmatpush1.bf16.xpose.msra.mxu0 0
        %1186 = vmatprep.subr.bf16.mxu0 0
        %1187 = vmatpush1.bf16.xpose.msra.mxu0 0
        %1188 = vmatprep.subr.bf16.mxu0 0
        %1189 = vmatpush1.bf16.xpose.msra.mxu0 0
        %1190 = vmatprep.subr.bf16.mxu0 0
        %1191 = vmatpush1.bf16.xpose.msra.mxu0 0
        %1192 = vmatprep.subr.bf16.mxu0 0
        %1193 = vmatpush1.bf16.xpose.msra.mxu0 0
        %1194 = vmatprep.subr.bf16.mxu0 0
        %1195 = vmatpush1.bf16.xpose.msra.mxu0 0
        %1196 = vmatprep.subr.bf16.mxu0 0
        %1197 = vmatpush1.bf16.xpose.msra.mxu0 %v1180
        %1198 = vmatprep.subr.bf16.mxu0 0
        %1199 = vmatpush2.bf16.xpose.msra.mxu0 0
        %1200 = vmatprep.subr.bf16.mxu0 0
        %1201 = vmatpush2.bf16.xpose.msra.mxu0 0
        %1202 = vmatprep.subr.bf16.mxu0 0
        %1203 = vmatpush2.bf16.xpose.msra.mxu0 0
        %1204 = vmatprep.subr.bf16.mxu0 0
        %1205 = vmatpush2.bf16.xpose.msra.mxu0 0
        %1206 = vmatprep.subr.bf16.mxu0 0
        %1207 = vmatpush2.bf16.xpose.msra.mxu0 0
        %1208 = vmatprep.subr.bf16.mxu0 0
        %1209 = vmatpush2.bf16.xpose.msra.mxu0 0
        %1210 = vmatprep.subr.bf16.mxu0 0
        %1211 = vmatpush2.bf16.xpose.msra.mxu0 0
        %1212 = vmatprep.subr.bf16.mxu0 0
        %1213 = vmatpush2.bf16.xpose.msra.mxu0 0
        %1214 = vmatprep.mubr.bf16.mxu0 0
        %1215 = vmatmul.mubr.bf16.gmra.mxu0 %v1177
        %v1216 = vpop.f32.mrf.mxu0
        %v1217 = vadd.f32 0.0, %v1216
        %v1218 = vpop.f32.mrf.mxu0
        %v1219 = vpop.f32.mrf.mxu0
        %v1220 = vpop.f32.mrf.mxu0
        %1221 = vdwg.mxu0
        %1222 = vrot.lane.b32.xlu0 %v485, 72
        %v1223 = vpop.permute.xlu0 %1222
        %1224 = vrot.lane.b32.xlu0 %v485, 104
        %v1225 = vpop.permute.xlu0 %1224
        %v1227 = vsel %vm489, %v1223, 0
        %v1230 = vsel %vm489, %v1225, 0
        %1232 = vmatprep.subr.bf16.mxu0 0
        %1233 = vmatpush1.bf16.xpose.msra.mxu0 0
        %1234 = vmatprep.subr.bf16.mxu0 0
        %1235 = vmatpush1.bf16.xpose.msra.mxu0 0
        %1236 = vmatprep.subr.bf16.mxu0 0
        %1237 = vmatpush1.bf16.xpose.msra.mxu0 0
        %1238 = vmatprep.subr.bf16.mxu0 0
        %1239 = vmatpush1.bf16.xpose.msra.mxu0 0
        %1240 = vmatprep.subr.bf16.mxu0 0
        %1241 = vmatpush1.bf16.xpose.msra.mxu0 0
        %1242 = vmatprep.subr.bf16.mxu0 0
        %1243 = vmatpush1.bf16.xpose.msra.mxu0 0
        %1244 = vmatprep.subr.bf16.mxu0 0
        %1245 = vmatpush1.bf16.xpose.msra.mxu0 0
        %1246 = vmatprep.subr.bf16.mxu0 0
        %1247 = vmatpush1.bf16.xpose.msra.mxu0 %v1230
        %1248 = vmatprep.subr.bf16.mxu0 0
        %1249 = vmatpush2.bf16.xpose.msra.mxu0 0
        %1250 = vmatprep.subr.bf16.mxu0 0
        %1251 = vmatpush2.bf16.xpose.msra.mxu0 0
        %1252 = vmatprep.subr.bf16.mxu0 0
        %1253 = vmatpush2.bf16.xpose.msra.mxu0 0
        %1254 = vmatprep.subr.bf16.mxu0 0
        %1255 = vmatpush2.bf16.xpose.msra.mxu0 0
        %1256 = vmatprep.subr.bf16.mxu0 0
        %1257 = vmatpush2.bf16.xpose.msra.mxu0 0
        %1258 = vmatprep.subr.bf16.mxu0 0
        %1259 = vmatpush2.bf16.xpose.msra.mxu0 0
        %1260 = vmatprep.subr.bf16.mxu0 0
        %1261 = vmatpush2.bf16.xpose.msra.mxu0 0
        %1262 = vmatprep.subr.bf16.mxu0 0
        %1263 = vmatpush2.bf16.xpose.msra.mxu0 0
        %1264 = vmatprep.mubr.bf16.mxu0 0
        %1265 = vmatmul.mubr.bf16.gmra.mxu0 %v1227
        %v1266 = vpop.f32.mrf.mxu0
        %v1267 = vadd.f32 0.0, %v1266
        %v1268 = vpop.f32.mrf.mxu0
        %v1269 = vpop.f32.mrf.mxu0
        %v1270 = vpop.f32.mrf.mxu0
        %1271 = vdwg.mxu0
        %1272 = vrot.lane.b32.xlu0 %v486, 72
        %v1273 = vpop.permute.xlu0 %1272
        %1274 = vrot.lane.b32.xlu0 %v486, 104
        %v1275 = vpop.permute.xlu0 %1274
        %v1277 = vsel %vm489, %v1273, 0
        %v1280 = vsel %vm489, %v1275, 0
        %1282 = vmatprep.subr.bf16.mxu0 0
        %1283 = vmatpush1.bf16.xpose.msra.mxu0 0
        %1284 = vmatprep.subr.bf16.mxu0 0
        %1285 = vmatpush1.bf16.xpose.msra.mxu0 0
        %1286 = vmatprep.subr.bf16.mxu0 0
        %1287 = vmatpush1.bf16.xpose.msra.mxu0 0
        %1288 = vmatprep.subr.bf16.mxu0 0
        %1289 = vmatpush1.bf16.xpose.msra.mxu0 0
        %1290 = vmatprep.subr.bf16.mxu0 0
        %1291 = vmatpush1.bf16.xpose.msra.mxu0 0
        %1292 = vmatprep.subr.bf16.mxu0 0
        %1293 = vmatpush1.bf16.xpose.msra.mxu0 0
        %1294 = vmatprep.subr.bf16.mxu0 0
        %1295 = vmatpush1.bf16.xpose.msra.mxu0 0
        %1296 = vmatprep.subr.bf16.mxu0 0
        %1297 = vmatpush1.bf16.xpose.msra.mxu0 %v1280
        %1298 = vmatprep.subr.bf16.mxu0 0
        %1299 = vmatpush2.bf16.xpose.msra.mxu0 0
        %1300 = vmatprep.subr.bf16.mxu0 0
        %1301 = vmatpush2.bf16.xpose.msra.mxu0 0
        %1302 = vmatprep.subr.bf16.mxu0 0
        %1303 = vmatpush2.bf16.xpose.msra.mxu0 0
        %1304 = vmatprep.subr.bf16.mxu0 0
        %1305 = vmatpush2.bf16.xpose.msra.mxu0 0
        %1306 = vmatprep.subr.bf16.mxu0 0
        %1307 = vmatpush2.bf16.xpose.msra.mxu0 0
        %1308 = vmatprep.subr.bf16.mxu0 0
        %1309 = vmatpush2.bf16.xpose.msra.mxu0 0
        %1310 = vmatprep.subr.bf16.mxu0 0
        %1311 = vmatpush2.bf16.xpose.msra.mxu0 0
        %1312 = vmatprep.subr.bf16.mxu0 0
        %1313 = vmatpush2.bf16.xpose.msra.mxu0 0
        %1314 = vmatprep.mubr.bf16.mxu0 0
        %1315 = vmatmul.mubr.bf16.gmra.mxu0 %v1277
        %v1316 = vpop.f32.mrf.mxu0
        %v1317 = vadd.f32 0.0, %v1316
        %v1318 = vpop.f32.mrf.mxu0
        %v1319 = vpop.f32.mrf.mxu0
        %v1320 = vpop.f32.mrf.mxu0
        %1321 = vdwg.mxu0
        %v1322 = vsel %vm489, %v1217, -inf
        %v1323 = vrot.slane %v1322, 4
        %v1324 = vmax.f32 %v1322, %v1323
        %v1325 = vrot.slane %v1324, 2
        %v1326 = vmax.f32 %v1324, %v1325
        %v1327 = vrot.slane %v1326, 1
        %v1328 = vmax.f32 %v1326, %v1327
        %v1329 = vsel %vm489, %v1267, -inf
        %v1330 = vrot.slane %v1329, 4
        %v1331 = vmax.f32 %v1329, %v1330
        %v1332 = vrot.slane %v1331, 2
        %v1333 = vmax.f32 %v1331, %v1332
        %v1334 = vrot.slane %v1333, 1
        %v1335 = vmax.f32 %v1333, %v1334
        %v1336 = vsel %vm489, %v1317, -inf
        %v1337 = vrot.slane %v1336, 4
        %v1338 = vmax.f32 %v1336, %v1337
        %v1339 = vrot.slane %v1338, 2
        %v1340 = vmax.f32 %v1338, %v1339
        %v1341 = vrot.slane %v1340, 1
        %v1342 = vmax.f32 %v1340, %v1341
        %v1343 = vsub.f32 %v1217, %v1328
        %v1344 = vsub.f32 %v1267, %v1335
        %v1345 = vsub.f32 %v1317, %v1342
        %v1346 = vmul.f32 %v1343, 1.442695
        %v1347 = vpow.pop %v1346
        %v1348 = vmul.f32 %v1344, 1.442695
        %v1349 = vpow.pop %v1348
        %v1350 = vmul.f32 %v1345, 1.442695
        %v1351 = vpow.pop %v1350
        %v1352 = vsel %vm489, %v1347, 0.0
        %v1353 = vrot.slane %v1352, 4
        %v1354 = vadd.f32 %v1352, %v1353
        %v1355 = vrot.slane %v1354, 2
        %v1356 = vadd.f32 %v1354, %v1355
        %v1357 = vrot.slane %v1356, 1
        %v1358 = vadd.f32 %v1356, %v1357
        %v1359 = vsel %vm489, %v1349, 0.0
        %v1360 = vrot.slane %v1359, 4
        %v1361 = vadd.f32 %v1359, %v1360
        %v1362 = vrot.slane %v1361, 2
        %v1363 = vadd.f32 %v1361, %v1362
        %v1364 = vrot.slane %v1363, 1
        %v1365 = vadd.f32 %v1363, %v1364
        %v1366 = vsel %vm489, %v1351, 0.0
        %v1367 = vrot.slane %v1366, 4
        %v1368 = vadd.f32 %v1366, %v1367
        %v1369 = vrot.slane %v1368, 2
        %v1370 = vadd.f32 %v1368, %v1369
        %v1371 = vrot.slane %v1370, 1
        %v1372 = vadd.f32 %v1370, %v1371
        %v1373 = vrcp.pop %v1358
        %v1374 = vrcp.pop %v1365
        %v1375 = vrcp.pop %v1372
        %v1376 = vmul.f32 %v1347, %v1373
        %v1377 = vmul.f32 %v1349, %v1374
        %v1378 = vmul.f32 %v1351, %v1375
        %v1379 = vsel %vm489, %v1376, 0.0
        %1380 = vadd.xlane.f32.xlu0 %v1379
        %v1381 = vpop.xlane.xlu0 %1380
        %v1382 = vsel %vm489, %v1377, 0.0
        %1383 = vadd.xlane.f32.xlu0 %v1382
        %v1384 = vpop.xlane.xlu0 %1383
        %v1385 = vsel %vm489, %v1378, 0.0
        %1386 = vadd.xlane.f32.xlu0 %v1385
        %v1387 = vpop.xlane.xlu0 %1386
        %v1388 = vmul.f32 %v1381, %v454
        %v1389 = vmul.f32 %v1384, %v457
        %v1390 = vmul.f32 %v1387, %v462
        %1394 = vrot.lane.b32.xlu0 %v1388, 125
        %v1395 = vpop.permute.xlu0 %1394
        %1396 = vrot.lane.b32.xlu0 %v1389, 125
        %v1397 = vpop.permute.xlu0 %1396
        %1398 = vrot.lane.b32.xlu0 %v1390, 125
        %v1399 = vpop.permute.xlu0 %1398
        %v1403 = vadd.f32 %v1169, %v1395
        %v1404 = vadd.f32 %v1170, %v1397
        %v1405 = vadd.f32 %v1171, %v1399
        %vm1406 = vcmask 531968
        %v1407 = vsel %vm1406, %v1403, 0.0
        %v1408 = vrot.slane %v1407, 4
        %v1409 = vadd.f32 %v1407, %v1408
        %v1410 = vrot.slane %v1409, 2
        %v1411 = vadd.f32 %v1409, %v1410
        %v1412 = vrot.slane %v1411, 1
        %v1413 = vadd.f32 %v1411, %v1412
        %v1414 = vsel %vm1406, %v1404, 0.0
        %v1415 = vrot.slane %v1414, 4
        %v1416 = vadd.f32 %v1414, %v1415
        %v1417 = vrot.slane %v1416, 2
        %v1418 = vadd.f32 %v1416, %v1417
        %v1419 = vrot.slane %v1418, 1
        %v1420 = vadd.f32 %v1418, %v1419
        %v1421 = vsel %vm1406, %v1405, 0.0
        %v1422 = vrot.slane %v1421, 4
        %v1423 = vadd.f32 %v1421, %v1422
        %v1424 = vrot.slane %v1423, 2
        %v1425 = vadd.f32 %v1423, %v1424
        %v1426 = vrot.slane %v1425, 1
        %v1427 = vadd.f32 %v1425, %v1426
        %s1428 = sld [smem:[#allocation2]]
        %v1429 = vstv %s1428
        %v1430 = vadd.f32 %v1413, %v1429
        %v1431 = vadd.f32 %v1420, %v1429
        %v1432 = vadd.f32 %v1427, %v1429
        %1436 = vrot.lane.b32.xlu0 %v1430, 64
        %v1437 = vpop.permute.xlu0 %1436
        %1438 = vrot.lane.b32.xlu0 %v1431, 64
        %v1439 = vpop.permute.xlu0 %1438
        %1440 = vrot.lane.b32.xlu0 %v1432, 64
        %v1441 = vpop.permute.xlu0 %1440
        %vm1445 = vcmask 0
        %1446 = vst.msk [vmem:[%s300] sm:$0x1] %vm1445, %v1437
        %1447 = vst.msk [vmem:[%s300 + $0x1] sm:$0x1] %vm1445, %v1439
        %1448 = vst.msk [vmem:[%s300 + $0x2] sm:$0x1] %vm1445, %v1441
        %s1449 = smul.u32 3, %s22
        %p1450 = scmp.lt.s32.totalorder %s1449, 5
        %s1451 = scalar_select %p1450, %s1449, 5
        %s1452 = scalar_lea.vmem %s6, %s1451
        // Predicated region
        $region57: #{tpu_custom_call.1} parent=43 // pred_check
          %p1453 = pneg %p171
        $region58: #{tpu_custom_call.1} parent=43 // pred_check_branch
          %1455 = sbr.rel (%p1453) target = $region60
        $region59: #{tpu_custom_call.1} parent=43 // pred_region
          %s1456 = smul.u32 3, %s22
        $region60: #{tpu_custom_call.1} parent=43 // pred_fallthru
          _
      $region44: #{tpu_custom_call.1} parent=5 // pred_fallthru
        _
      %p1457 = scmp.le.s32.totalorder 2, %s17
      // Predicated region
      $region61: #{tpu_custom_call.1} parent=5 // pred_check
        %p1458 = pneg %p1457
      $region62: #{tpu_custom_call.1} parent=5 // pred_check_branch
        %1460 = sbr.rel (%p1458) target = $region64
      $region63: #{tpu_custom_call.1} parent=5 // pred_region
        %s1461 = ssub.s32 %s17, 2
        // Predicated region
        $region65: #{tpu_custom_call.1} parent=63 // pred_check
          %p1462 = pneg %p177
        $region66: #{tpu_custom_call.1} parent=63 // pred_check_branch
          %1464 = sbr.rel (%p1462) target = $region68
        $region67: #{tpu_custom_call.1} parent=63 // pred_region
          %s1465 = smul.u32 3, %s23
          %p1466 = scmp.lt.s32.totalorder %s1465, 5
          %s1467 = scalar_select %p1466, %s1465, 5
          %s1468 = scalar_lea.vmem %s6, %s1467
        $region68: #{tpu_custom_call.1} parent=63 // pred_fallthru
          _
      $region64: #{tpu_custom_call.1} parent=5 // pred_fallthru
        _
    $region6: #{tpu_custom_call.1} parent=1 // loop_footer
      %s21 = sadd.s32 1, %s17
    $region7: #{tpu_custom_call.1} parent=1 // loop_footer_branch
      %16 = sbr.rel target = $region3
    $region8: #{tpu_custom_call.1} parent=1 // loop_exit
      _
    %1469 = vsyncpa [#allocation4], 1
    %s1470 = scalar_lea.sflag [#allocation4], 1
    %1471 = vsyncpa %s1470, 1
    %1472 = vsyncpa [#allocation6], 1

</llo_original>
